<compile_context>
chip_gen: v6e
topology: v6e:2x2x1
jax: 0.10.0
libtpu: 0.0.40
codegen_flags: <defaults>
</compile_context>

<pallas_src>
import math

import jax
import jax.numpy as jnp
from jax import lax
from jax.experimental import pallas as pl
from jax.experimental.pallas import tpu as pltpu

# bf16 operands feed the MXU at full rate and halve HBM/VMEM traffic.
_MXU_DTYPE = jnp.bfloat16
# Above the 16/32 MiB scoped defaults (v5e/v6e), below v7x's 64 MiB physical VMEM.
_VMEM_LIMIT = 48 * 1024 * 1024


# ---------------------------------------------------------------------------
# Tiling helper: largest multiple of `align` <= target that divides dim, else
# fall back to the full dim (always a legal block extent).
# ---------------------------------------------------------------------------
def _pick_tile(dim, target, align):
    t = min(target, dim)
    t -= t % align
    while t >= align:
        if dim % t == 0:
            return t
        t -= align
    return dim


# ---------------------------------------------------------------------------
# Compact RoPE tables: (S, head_dim//2) in f32 (full table is [t, t] duplicated).
# ---------------------------------------------------------------------------
def rope_half_tables(dim, n_seq):
    inv_freq = 1.0 / (10000.0 ** (jnp.arange(0, dim, 2, dtype=jnp.float32) / dim))
    pos = jnp.arange(n_seq, dtype=jnp.float32)
    freqs = pos[:, None] * inv_freq[None, :]          # (S, dim//2)
    return jnp.cos(freqs), jnp.sin(freqs)


# ---------------------------------------------------------------------------
# Fused QKV projection + RoPE kernel
#   grid = (B, S // ts, K // tk); bf16 MXU operands, f32 accumulators; RoPE is
#   applied once in the epilogue (last k-tile) on packed (ts, heads*hd) rows with
#   the compact per-row cos/sin tables.
# ---------------------------------------------------------------------------
def _make_qkv_rope_kernel(n_head, n_kv_head, head_dim, n_k_tiles):
    half = head_dim // 2

    def rope_packed(acc, c, s, n_heads):
        # Per-head rotate-half via static lane slices; c/s are compact (ts, half)
        # f32 tables shared by every head.
        # TODO(synk): a segmented pltpu.roll + signed-sin table would remove the lane
        # concat, but roll over sub-128-lane head slices is not reliably lowerable.
        parts = []
        for hh in range(n_heads):
            lo = hh * head_dim
            x1 = acc[:, lo:lo + half]
            x2 = acc[:, lo + half:lo + head_dim]
            parts.append(x1 * c - x2 * s)
            parts.append(x2 * c + x1 * s)
        return jnp.concatenate(parts, axis=-1)

    def kernel(x_ref, wq_ref, wk_ref, wv_ref, cos_ref, sin_ref,
               q_ref, k_ref, v_ref, q_acc, k_acc, v_acc):
        kk = pl.program_id(2)

        @pl.when(kk == 0)
        def _():
            q_acc[...] = jnp.zeros_like(q_acc)
            k_acc[...] = jnp.zeros_like(k_acc)
            v_acc[...] = jnp.zeros_like(v_acc)

        x = x_ref[...]                              # (ts, tk) bf16
        dn = (((1,), (1,)), ((), ()))               # contract with PyTorch (N, K) weight
        q_acc[...] += lax.dot_general(x, wq_ref[...], dn,
                                      preferred_element_type=jnp.float32)
        k_acc[...] += lax.dot_general(x, wk_ref[...], dn,
                                      preferred_element_type=jnp.float32)
        v_acc[...] += lax.dot_general(x, wv_ref[...], dn,
                                      preferred_element_type=jnp.float32)

        @pl.when(kk == n_k_tiles - 1)
        def _():
            c = cos_ref[...]                        # (ts, half) f32
            s = sin_ref[...]
            q_ref[...] = rope_packed(q_acc[...], c, s, n_head).astype(q_ref.dtype)
            k_ref[...] = rope_packed(k_acc[...], c, s, n_kv_head).astype(k_ref.dtype)
            v_ref[...] = v_acc[...].astype(v_ref.dtype)

    return kernel


def qkv_rope_proj(h, wq, wk, wv, cos_h, sin_h, n_head, n_kv_head, head_dim):
    """h: (B, S, K); wq: (n_head*hd, K); wk/wv: (n_kv_head*hd, K) (PyTorch layout)."""
    B, S, K = h.shape
    hd = head_dim
    nq = n_head * hd
    nk = n_kv_head * hd

    ts = _pick_tile(S, 256, 8)
    tk = _pick_tile(K, 512, 128)
    n_k_tiles = K // tk
    grid = (B, S // ts, n_k_tiles)

    kernel = _make_qkv_rope_kernel(n_head, n_kv_head, hd, n_k_tiles)
    flops = 2 * B * S * K * (nq + 2 * nk)
    bytes_accessed = (B * S * K + (nq + 2 * nk) * K + B * S * (nq + 2 * nk)) * 2 \
        + 2 * S * (hd // 2) * 4

    return pl.pallas_call(
        kernel,
        out_shape=(
            jax.ShapeDtypeStruct((B, S, nq), _MXU_DTYPE),
            jax.ShapeDtypeStruct((B, S, nk), _MXU_DTYPE),
            jax.ShapeDtypeStruct((B, S, nk), _MXU_DTYPE),
        ),
        grid=grid,
        in_specs=[
            pl.BlockSpec((None, ts, tk), lambda b, i, kk: (b, i, kk)),
            # TODO(synk): full-N weight slabs; for production dims on v7x (64 MiB VMEM)
            # add an N-tile grid axis or split q/k/v into separate calls.
            pl.BlockSpec((nq, tk), lambda b, i, kk: (0, kk)),
            pl.BlockSpec((nk, tk), lambda b, i, kk: (0, kk)),
            pl.BlockSpec((nk, tk), lambda b, i, kk: (0, kk)),
            pl.BlockSpec((ts, hd // 2), lambda b, i, kk: (i, 0)),
            pl.BlockSpec((ts, hd // 2), lambda b, i, kk: (i, 0)),
        ],
        out_specs=[
            pl.BlockSpec((None, ts, nq), lambda b, i, kk: (b, i, 0)),
            pl.BlockSpec((None, ts, nk), lambda b, i, kk: (b, i, 0)),
            pl.BlockSpec((None, ts, nk), lambda b, i, kk: (b, i, 0)),
        ],
        scratch_shapes=[
            pltpu.VMEM((ts, nq), jnp.float32),
            pltpu.VMEM((ts, nk), jnp.float32),
            pltpu.VMEM((ts, nk), jnp.float32),
        ],
        compiler_params=pltpu.CompilerParams(
            dimension_semantics=("parallel", "parallel", "arbitrary"),
            vmem_limit_bytes=_VMEM_LIMIT),
        cost_estimate=pl.CostEstimate(
            flops=int(flops), transcendentals=0, bytes_accessed=int(bytes_accessed)),
    )(h.astype(_MXU_DTYPE), wq.astype(_MXU_DTYPE), wk.astype(_MXU_DTYPE),
      wv.astype(_MXU_DTYPE), cos_h, sin_h)


# ---------------------------------------------------------------------------
# Flash-style causal attention kernel (online softmax, GQA via grouped stacking)
#   q: (B, S, n_head*hd) pre-roped & pre-scaled (bf16); k/v: (B, S, n_kv_head*hd).
# ---------------------------------------------------------------------------
def _make_flash_attn_kernel(n_head, n_kv_head, head_dim, tq, tkv, n_kv_tiles):
    groups = n_head // n_kv_head
    neg = -1e30     # plain Python float -> no captured trace-time constants

    def kernel(q_ref, k_ref, v_ref, o_ref, m_sc, l_sc, acc_sc):
        i = pl.program_id(1)
        j = pl.program_id(2)

        @pl.when(j == 0)
        def _():
            m_sc[...] = jnp.full_like(m_sc, neg)
            l_sc[...] = jnp.zeros_like(l_sc)
            acc_sc[...] = jnp.zeros_like(acc_sc)

        row_first = i * tq
        row_last = row_first + (tq - 1)
        col_first = j * tkv
        col_last = col_first + (tkv - 1)
        contributes = col_first <= row_last      # lower-triangle or diagonal tile
        straddles = col_last > row_first         # tile touches the diagonal

        def process(masked):
            q = q_ref[...]                       # (tq, n_head*hd)     bf16
            k = k_ref[...]                       # (tkv, n_kv_head*hd) bf16
            v = v_ref[...]
            if masked:
                row = row_first + lax.broadcasted_iota(jnp.int32, (tq, tkv), 0)
                col = col_first + lax.broadcasted_iota(jnp.int32, (tq, tkv), 1)
                mask = jnp.tile(col > row, (groups, 1))          # (groups*tq, tkv)
            dn = (((1,), (1,)), ((), ()))
            for g in range(n_kv_head):
                # Stack the `groups` q-heads sharing this KV head along M so the MXU
                # sees one (groups*tq, hd) x (hd, tkv) matmul per KV head (implicit
                # repeat_kv, far better MXU occupancy than per-q-head dots).
                q_stack = jnp.concatenate(
                    [q[:, hh * head_dim:(hh + 1) * head_dim]
                     for hh in range(g * groups, (g + 1) * groups)], axis=0)
                k_g = k[:, g * head_dim:(g + 1) * head_dim]       # (tkv, hd)
                v_g = v[:, g * head_dim:(g + 1) * head_dim]

                s = lax.dot_general(q_stack, k_g, dn,
                                    preferred_element_type=jnp.float32)
                if masked:
                    s = jnp.where(mask, neg, s)   # scale already folded into wq

                m_prev = m_sc[g]                                  # (groups*tq, 1)
                m_new = jnp.maximum(m_prev, s.max(axis=-1, keepdims=True))
                alpha = jnp.exp(m_prev - m_new)
                p = jnp.exp(s - m_new)
                l_sc[g] = alpha * l_sc[g] + p.sum(axis=-1, keepdims=True)
                acc_sc[g] = alpha * acc_sc[g] + jnp.dot(
                    p.astype(v_g.dtype), v_g, preferred_element_type=jnp.float32)
                m_sc[g] = m_new

        @pl.when(jnp.logical_and(contributes, jnp.logical_not(straddles)))
        def _():
            process(masked=False)    # interior tile: no causal-mask VPU work

        @pl.when(jnp.logical_and(contributes, straddles))
        def _():
            process(masked=True)     # diagonal tile: build & apply the mask

        @pl.when(j == n_kv_tiles - 1)
        def _():
            pieces = []
            for g in range(n_kv_head):
                inv = pl.reciprocal(l_sc[g], approx=True)         # EUP slot
                out_g = acc_sc[g] * inv                           # (groups*tq, hd)
                for r in range(groups):                           # un-stack per head
                    pieces.append(out_g[r * tq:(r + 1) * tq, :])
            # single lane-dense store of the full (tq, n_head*hd) tile
            o_ref[...] = jnp.concatenate(pieces, axis=-1).astype(o_ref.dtype)

    return kernel


def flash_attention(q, k, v, n_head, n_kv_head, head_dim):
    B, S, nq = q.shape
    nk = k.shape[-1]
    tq = _pick_tile(S, 256, 8)      # 256-512 good on v5e/v6e; ~256 on v7x
    tkv = _pick_tile(S, 256, 8)
    n_kv_tiles = S // tkv
    grid = (B, S // tq, n_kv_tiles)
    stack = tq * (n_head // n_kv_head)

    # Clamp the K/V block index so causally-dead (upper-triangle) steps revisit the
    # previous block and issue no new DMA (compute for them is skipped via pl.when).
    def kv_index(b, i, j):
        return (b, jnp.minimum(j, (i * tq + tq - 1) // tkv), 0)

    kernel = _make_flash_attn_kernel(n_head, n_kv_head, head_dim, tq, tkv, n_kv_tiles)
    flops = 2 * 2 * B * n_head * S * S * head_dim
    transcendentals = B * n_head * S * S
    bytes_accessed = B * S * (2 * nq + 2 * nk) * 2     # q+o, k+v in bf16

    return pl.pallas_call(
        kernel,
        out_shape=jax.ShapeDtypeStruct((B, S, nq), _MXU_DTYPE),
        grid=grid,
        in_specs=[
            pl.BlockSpec((None, tq, nq), lambda b, i, j: (b, i, 0)),
            pl.BlockSpec((None, tkv, nk), kv_index),
            pl.BlockSpec((None, tkv, nk), kv_index),
        ],
        out_specs=pl.BlockSpec((None, tq, nq), lambda b, i, j: (b, i, 0)),
        scratch_shapes=[
            pltpu.VMEM((n_kv_head, stack, 1), jnp.float32),          # running max m
            pltpu.VMEM((n_kv_head, stack, 1), jnp.float32),          # running sum l
            pltpu.VMEM((n_kv_head, stack, head_dim), jnp.float32),   # output acc
        ],
        compiler_params=pltpu.CompilerParams(
            dimension_semantics=("parallel", "parallel", "arbitrary"),
            vmem_limit_bytes=_VMEM_LIMIT),
        cost_estimate=pl.CostEstimate(
            flops=int(flops), transcendentals=int(transcendentals),
            bytes_accessed=int(bytes_accessed)),
    )(q, k, v)


# ---------------------------------------------------------------------------
# Tiled linear (o_proj): grid (M//tm, N//tn, K//tk), bf16 operands, f32 accumulator,
# weight kept in PyTorch (out, in) layout (no host transpose).
# ---------------------------------------------------------------------------
def _make_linear_kernel(n_k_tiles):
    def kernel(x_ref, w_ref, o_ref, acc_ref):
        kk = pl.program_id(2)

        @pl.when(kk == 0)
        def _():
            acc_ref[...] = jnp.zeros_like(acc_ref)

        dn = (((1,), (1,)), ((), ()))
        acc_ref[...] += lax.dot_general(x_ref[...], w_ref[...], dn,
                                        preferred_element_type=jnp.float32)

        @pl.when(kk == n_k_tiles - 1)
        def _():
            o_ref[...] = acc_ref[...].astype(o_ref.dtype)

    return kernel


def linear(x2d, w, out_dtype):
    """x2d: (M, K); w: (N, K) in PyTorch layout."""
    M, K = x2d.shape
    N = w.shape[0]
    tm = _pick_tile(M, 512, 8)
    tn = _pick_tile(N, 512, 128)
    tk = _pick_tile(K, 512, 128)
    n_k_tiles = K // tk
    grid = (M // tm, N // tn, n_k_tiles)

    return pl.pallas_call(
        _make_linear_kernel(n_k_tiles),
        out_shape=jax.ShapeDtypeStruct((M, N), out_dtype),
        grid=grid,
        in_specs=[
            pl.BlockSpec((tm, tk), lambda i, jn, kk: (i, kk)),
            pl.BlockSpec((tn, tk), lambda i, jn, kk: (jn, kk)),
        ],
        out_specs=pl.BlockSpec((tm, tn), lambda i, jn, kk: (i, jn)),
        scratch_shapes=[pltpu.VMEM((tm, tn), jnp.float32)],
        compiler_params=pltpu.CompilerParams(
            dimension_semantics=("parallel", "parallel", "arbitrary"),
            vmem_limit_bytes=_VMEM_LIMIT),
        cost_estimate=pl.CostEstimate(
            flops=int(2 * M * N * K), transcendentals=0,
            bytes_accessed=int((M * K + N * K) * 2 + M * N * 4)),
    )(x2d.astype(_MXU_DTYPE), w.astype(_MXU_DTYPE))


# ---------------------------------------------------------------------------
# Module forward (eval mode, no kv-cache, dropout=0, attention_bias=False)
# ---------------------------------------------------------------------------
def attention_forward(h, params, n_head, n_kv_head):
    # TODO(synk): kv-cache decode branch (use_kv_cache=True) is not implemented.
    B, S, dim = h.shape
    hd = dim // n_head
    cos_h, sin_h = rope_half_tables(hd, S)                      # compact f32 tables

    # Fold the 1/sqrt(head_dim) score scale into the q projection weight.
    wq_scaled = params["wq"] * (1.0 / math.sqrt(hd))

    q2, k2, v2 = qkv_rope_proj(h, wq_scaled, params["wk"], params["wv"],
                               cos_h, sin_h, n_head, n_kv_head, hd)
    attn = flash_attention(q2, k2, v2, n_head, n_kv_head, hd)   # (B, S, dim) bf16
    out = linear(attn.reshape(B * S, dim), params["wo"], h.dtype)
    return out.reshape(B, S, dim)


# ---------------------------------------------------------------------------
# Pure-JAX f32 reference (mirrors the PyTorch forward exactly, eval mode)
# ---------------------------------------------------------------------------
def reference_forward(h, params, n_head, n_kv_head):
    B, S, dim = h.shape
    hd = dim // n_head
    groups = n_head // n_kv_head

    q = h @ params["wq"].T
    k = h @ params["wk"].T
    v = h @ params["wv"].T
    q = q.reshape(B, S, n_head, hd)
    k = k.reshape(B, S, n_kv_head, hd)
    v = v.reshape(B, S, n_kv_head, hd)

    cos_h, sin_h = rope_half_tables(hd, S)
    cos = jnp.concatenate([cos_h, cos_h], axis=-1)[None, :, None, :]
    sin = jnp.concatenate([sin_h, sin_h], axis=-1)[None, :, None, :]

    def rot_half(x):
        x1, x2 = x[..., : hd // 2], x[..., hd // 2:]
        return jnp.concatenate([-x2, x1], axis=-1)

    q = q * cos + rot_half(q) * sin
    k = k * cos + rot_half(k) * sin

    k = jnp.repeat(k, groups, axis=2)
    v = jnp.repeat(v, groups, axis=2)

    q = q.transpose(0, 2, 1, 3)
    k = k.transpose(0, 2, 1, 3)
    v = v.transpose(0, 2, 1, 3)

    scores = jnp.einsum("bhqd,bhkd->bhqk", q, k) / math.sqrt(hd)
    mask = jnp.triu(jnp.full((S, S), -jnp.inf, dtype=h.dtype), k=1)
    scores = scores + mask[None, None]
    probs = jax.nn.softmax(scores.astype(jnp.float32), axis=-1).astype(q.dtype)
    out = jnp.einsum("bhqk,bhkd->bhqd", probs, v)
    out = out.transpose(0, 2, 1, 3).reshape(B, S, dim)
    return out @ params["wo"].T


# ---------------------------------------------------------------------------
if __name__ == "__main__":
    # config: hidden=32, n_head=4, n_kv_head=2 (GQA), head_dim=8, bias=False,
    # dropout=0.0, causal attention, eval mode, no kv-cache.
    B, S, hidden = 2, 16, 32
    n_head, n_kv_head = 4, 2
    hd = hidden // n_head

    key = jax.random.PRNGKey(0)
    k1, k2, k3, k4, k5 = jax.random.split(key, 5)
    scale = 0.05
    params = {
        "wq": jax.random.normal(k1, (hidden, hidden), jnp.float32) * scale,
        "wk": jax.random.normal(k2, (n_kv_head * hd, hidden), jnp.float32) * scale,
        "wv": jax.random.normal(k3, (n_kv_head * hd, hidden), jnp.float32) * scale,
        "wo": jax.random.normal(k4, (hidden, hidden), jnp.float32) * scale,
    }
    h = jax.random.normal(k5, (B, S, hidden), jnp.float32)

    out = attention_forward(h, params, n_head, n_kv_head)
    out = jax.block_until_ready(out)

    ref = jax.block_until_ready(reference_forward(h, params, n_head, n_kv_head))
    assert out.shape == (B, S, hidden)
    # tolerance reflects bf16 MXU operands + bf16 q/k/v/attn intermediates
    # (the reference path is pure f32); accumulation everywhere is f32.
    assert jnp.allclose(out, ref, atol=2e-2, rtol=2e-2), float(
        jnp.max(jnp.abs(out - ref))
    )
    print("KERNEL_OK")
</pallas_src>

<mosaic_0001>
module attributes {stable_mosaic.version = 11 : i64} {
  func.func @kernel(%arg0: i32, %arg1: i32, %arg2: i32, %arg3: memref<1x16x32xbf16, #tpu.memory_space<vmem>>, %arg4: memref<32x32xbf16, #tpu.memory_space<vmem>>, %arg5: memref<16x32xbf16, #tpu.memory_space<vmem>>, %arg6: memref<16x32xbf16, #tpu.memory_space<vmem>>, %arg7: memref<16x4xf32, #tpu.memory_space<vmem>>, %arg8: memref<16x4xf32, #tpu.memory_space<vmem>>, %arg9: memref<1x16x32xbf16, #tpu.memory_space<vmem>>, %arg10: memref<1x16x16xbf16, #tpu.memory_space<vmem>>, %arg11: memref<1x16x16xbf16, #tpu.memory_space<vmem>>, %arg12: memref<16x32xf32, #tpu.memory_space<vmem>>, %arg13: memref<16x16xf32, #tpu.memory_space<vmem>>, %arg14: memref<16x16xf32, #tpu.memory_space<vmem>>) attributes {dimension_semantics = [#tpu.dimension_semantics<parallel>, #tpu.dimension_semantics<parallel>, #tpu.dimension_semantics<arbitrary>], iteration_bounds = array<i64: 2, 1, 1>, scalar_prefetch = 0 : i64, scratch_operands = 3 : i64, tpu.core_type = #tpu.core_type<tc>, window_params = [{transform_indices = @transform_0, window_bounds = array<i64: 1, 16, 32>}, {transform_indices = @transform_1, window_bounds = array<i64: 32, 32>}, {transform_indices = @transform_2, window_bounds = array<i64: 16, 32>}, {transform_indices = @transform_3, window_bounds = array<i64: 16, 32>}, {transform_indices = @transform_4, window_bounds = array<i64: 16, 4>}, {transform_indices = @transform_5, window_bounds = array<i64: 16, 4>}, {transform_indices = @transform_6, window_bounds = array<i64: 1, 16, 32>}, {transform_indices = @transform_7, window_bounds = array<i64: 1, 16, 16>}, {transform_indices = @transform_8, window_bounds = array<i64: 1, 16, 16>}]} {
    %c0_i32 = arith.constant 0 : i32
    %0 = arith.cmpi eq, %arg2, %c0_i32 : i32
    %1 = arith.extui %0 : i1 to i32
    %c0_i32_0 = arith.constant 0 : i32
    %2 = arith.cmpi ne, %1, %c0_i32_0 : i32
    scf.if %2 {
      %cst_25 = arith.constant 0.000000e+00 : f32
      %23 = vector.broadcast %cst_25 : f32 to vector<16x32xf32>
      %c0_26 = arith.constant 0 : index
      %c0_27 = arith.constant 0 : index
      %24 = vector.load %arg12[%c0_26, %c0_27] : memref<16x32xf32, #tpu.memory_space<vmem>>, vector<16x32xf32>
      tpu.vector_store %arg12[%c0_26, %c0_27], %23 {strides = array<i32>} : memref<16x32xf32, #tpu.memory_space<vmem>>, vector<16x32xf32>,
      %cst_28 = arith.constant 0.000000e+00 : f32
      %25 = vector.broadcast %cst_28 : f32 to vector<16x16xf32>
      %c0_29 = arith.constant 0 : index
      %c0_30 = arith.constant 0 : index
      %26 = vector.load %arg13[%c0_29, %c0_30] : memref<16x16xf32, #tpu.memory_space<vmem>>, vector<16x16xf32>
      tpu.vector_store %arg13[%c0_29, %c0_30], %25 {strides = array<i32>} : memref<16x16xf32, #tpu.memory_space<vmem>>, vector<16x16xf32>,
      %cst_31 = arith.constant 0.000000e+00 : f32
      %27 = vector.broadcast %cst_31 : f32 to vector<16x16xf32>
      %c0_32 = arith.constant 0 : index
      %c0_33 = arith.constant 0 : index
      %28 = vector.load %arg14[%c0_32, %c0_33] : memref<16x16xf32, #tpu.memory_space<vmem>>, vector<16x16xf32>
      tpu.vector_store %arg14[%c0_32, %c0_33], %27 {strides = array<i32>} : memref<16x16xf32, #tpu.memory_space<vmem>>, vector<16x16xf32>,
    } else {
    }
    %c0 = arith.constant 0 : index
    %c0_1 = arith.constant 0 : index
    %c0_2 = arith.constant 0 : index
    %3 = vector.load %arg3[%c0, %c0_1, %c0_2] : memref<1x16x32xbf16, #tpu.memory_space<vmem>>, vector<1x16x32xbf16>
    %4 = vector.shape_cast %3 : vector<1x16x32xbf16> to vector<16x32xbf16>
    %c0_3 = arith.constant 0 : index
    %c0_4 = arith.constant 0 : index
    %5 = vector.load %arg12[%c0_3, %c0_4] : memref<16x32xf32, #tpu.memory_space<vmem>>, vector<16x32xf32>
    %c0_5 = arith.constant 0 : index
    %c0_6 = arith.constant 0 : index
    %6 = vector.load %arg4[%c0_5, %c0_6] : memref<32x32xbf16, #tpu.memory_space<vmem>>, vector<32x32xbf16>
    %cst = arith.constant dense<0.000000e+00> : vector<16x32xf32>
    %7 = tpu.matmul %4, %6, %cst {dimension_numbers = #tpu.dot_dimension_numbers<[1], [1], [0], [0], [0, 0, 1, 0], [], []>} : vector<16x32xbf16>, vector<32x32xbf16>, vector<16x32xf32> -> vector<16x32xf32>
    %8 = arith.addf %5, %7 : vector<16x32xf32>
    %c0_7 = arith.constant 0 : index
    %c0_8 = arith.constant 0 : index
    %9 = vector.load %arg12[%c0_7, %c0_8] : memref<16x32xf32, #tpu.memory_space<vmem>>, vector<16x32xf32>
    tpu.vector_store %arg12[%c0_7, %c0_8], %8 {strides = array<i32>} : memref<16x32xf32, #tpu.memory_space<vmem>>, vector<16x32xf32>,
    %c0_9 = arith.constant 0 : index
    %c0_10 = arith.constant 0 : index
    %10 = vector.load %arg13[%c0_9, %c0_10] : memref<16x16xf32, #tpu.memory_space<vmem>>, vector<16x16xf32>
    %c0_11 = arith.constant 0 : index
    %c0_12 = arith.constant 0 : index
    %11 = vector.load %arg5[%c0_11, %c0_12] : memref<16x32xbf16, #tpu.memory_space<vmem>>, vector<16x32xbf16>
    %cst_13 = arith.constant dense<0.000000e+00> : vector<16x16xf32>
    %12 = tpu.matmul %4, %11, %cst_13 {dimension_numbers = #tpu.dot_dimension_numbers<[1], [1], [0], [0], [0, 0, 1, 0], [], []>} : vector<16x32xbf16>, vector<16x32xbf16>, vector<16x16xf32> -> vector<16x16xf32>
    %13 = arith.addf %10, %12 : vector<16x16xf32>
    %c0_14 = arith.constant 0 : index
    %c0_15 = arith.constant 0 : index
    %14 = vector.load %arg13[%c0_14, %c0_15] : memref<16x16xf32, #tpu.memory_space<vmem>>, vector<16x16xf32>
    tpu.vector_store %arg13[%c0_14, %c0_15], %13 {strides = array<i32>} : memref<16x16xf32, #tpu.memory_space<vmem>>, vector<16x16xf32>,
    %c0_16 = arith.constant 0 : index
    %c0_17 = arith.constant 0 : index
    %15 = vector.load %arg14[%c0_16, %c0_17] : memref<16x16xf32, #tpu.memory_space<vmem>>, vector<16x16xf32>
    %c0_18 = arith.constant 0 : index
    %c0_19 = arith.constant 0 : index
    %16 = vector.load %arg6[%c0_18, %c0_19] : memref<16x32xbf16, #tpu.memory_space<vmem>>, vector<16x32xbf16>
    %cst_20 = arith.constant dense<0.000000e+00> : vector<16x16xf32>
    %17 = tpu.matmul %4, %16, %cst_20 {dimension_numbers = #tpu.dot_dimension_numbers<[1], [1], [0], [0], [0, 0, 1, 0], [], []>} : vector<16x32xbf16>, vector<16x32xbf16>, vector<16x16xf32> -> vector<16x16xf32>
    %18 = arith.addf %15, %17 : vector<16x16xf32>
    %c0_21 = arith.constant 0 : index
    %c0_22 = arith.constant 0 : index
    %19 = vector.load %arg14[%c0_21, %c0_22] : memref<16x16xf32, #tpu.memory_space<vmem>>, vector<16x16xf32>
    tpu.vector_store %arg14[%c0_21, %c0_22], %18 {strides = array<i32>} : memref<16x16xf32, #tpu.memory_space<vmem>>, vector<16x16xf32>,
    %c0_i32_23 = arith.constant 0 : i32
    %20 = arith.cmpi eq, %arg2, %c0_i32_23 : i32
    %21 = arith.extui %20 : i1 to i32
    %c0_i32_24 = arith.constant 0 : i32
    %22 = arith.cmpi ne, %21, %c0_i32_24 : i32
    scf.if %22 {
      %c0_25 = arith.constant 0 : index
      %c0_26 = arith.constant 0 : index
      %23 = vector.load %arg7[%c0_25, %c0_26] : memref<16x4xf32, #tpu.memory_space<vmem>>, vector<16x4xf32>
      %c0_27 = arith.constant 0 : index
      %c0_28 = arith.constant 0 : index
      %24 = vector.load %arg8[%c0_27, %c0_28] : memref<16x4xf32, #tpu.memory_space<vmem>>, vector<16x4xf32>
      %c0_29 = arith.constant 0 : index
      %c0_30 = arith.constant 0 : index
      %25 = vector.load %arg12[%c0_29, %c0_30] : memref<16x32xf32, #tpu.memory_space<vmem>>, vector<16x32xf32>
      %26 = vector.extract_strided_slice %25 {offsets = [0, 0], sizes = [16, 4], strides = [1, 1]} : vector<16x32xf32> to vector<16x4xf32>
      %27 = vector.extract_strided_slice %25 {offsets = [0, 4], sizes = [16, 4], strides = [1, 1]} : vector<16x32xf32> to vector<16x4xf32>
      %28 = arith.mulf %26, %23 : vector<16x4xf32>
      %29 = arith.mulf %27, %24 : vector<16x4xf32>
      %30 = arith.subf %28, %29 : vector<16x4xf32>
      %31 = arith.mulf %27, %23 : vector<16x4xf32>
      %32 = arith.mulf %26, %24 : vector<16x4xf32>
      %33 = arith.addf %31, %32 : vector<16x4xf32>
      %34 = vector.extract_strided_slice %25 {offsets = [0, 8], sizes = [16, 4], strides = [1, 1]} : vector<16x32xf32> to vector<16x4xf32>
      %35 = vector.extract_strided_slice %25 {offsets = [0, 12], sizes = [16, 4], strides = [1, 1]} : vector<16x32xf32> to vector<16x4xf32>
      %36 = arith.mulf %34, %23 : vector<16x4xf32>
      %37 = arith.mulf %35, %24 : vector<16x4xf32>
      %38 = arith.subf %36, %37 : vector<16x4xf32>
      %39 = arith.mulf %35, %23 : vector<16x4xf32>
      %40 = arith.mulf %34, %24 : vector<16x4xf32>
      %41 = arith.addf %39, %40 : vector<16x4xf32>
      %42 = vector.extract_strided_slice %25 {offsets = [0, 16], sizes = [16, 4], strides = [1, 1]} : vector<16x32xf32> to vector<16x4xf32>
      %43 = vector.extract_strided_slice %25 {offsets = [0, 20], sizes = [16, 4], strides = [1, 1]} : vector<16x32xf32> to vector<16x4xf32>
      %44 = arith.mulf %42, %23 : vector<16x4xf32>
      %45 = arith.mulf %43, %24 : vector<16x4xf32>
      %46 = arith.subf %44, %45 : vector<16x4xf32>
      %47 = arith.mulf %43, %23 : vector<16x4xf32>
      %48 = arith.mulf %42, %24 : vector<16x4xf32>
      %49 = arith.addf %47, %48 : vector<16x4xf32>
      %50 = vector.extract_strided_slice %25 {offsets = [0, 24], sizes = [16, 4], strides = [1, 1]} : vector<16x32xf32> to vector<16x4xf32>
      %51 = vector.extract_strided_slice %25 {offsets = [0, 28], sizes = [16, 4], strides = [1, 1]} : vector<16x32xf32> to vector<16x4xf32>
      %52 = arith.mulf %50, %23 : vector<16x4xf32>
      %53 = arith.mulf %51, %24 : vector<16x4xf32>
      %54 = arith.subf %52, %53 : vector<16x4xf32>
      %55 = arith.mulf %51, %23 : vector<16x4xf32>
      %56 = arith.mulf %50, %24 : vector<16x4xf32>
      %57 = arith.addf %55, %56 : vector<16x4xf32>
      %58 = tpu.concatenate %30, %33, %38, %41, %46, %49, %54, %57 in 1 : vector<16x4xf32>, vector<16x4xf32>, vector<16x4xf32>, vector<16x4xf32>, vector<16x4xf32>, vector<16x4xf32>, vector<16x4xf32>, vector<16x4xf32> -> vector<16x32xf32>
      %59 = arith.truncf %58 : vector<16x32xf32> to vector<16x32xbf16>
      %c0_31 = arith.constant 0 : index
      %c0_32 = arith.constant 0 : index
      %c0_33 = arith.constant 0 : index
      %60 = vector.load %arg9[%c0_31, %c0_32, %c0_33] : memref<1x16x32xbf16, #tpu.memory_space<vmem>>, vector<1x16x32xbf16>
      %61 = vector.shape_cast %60 : vector<1x16x32xbf16> to vector<16x32xbf16>
      %62 = vector.shape_cast %59 : vector<16x32xbf16> to vector<1x16x32xbf16>
      tpu.vector_store %arg9[%c0_31, %c0_32, %c0_33], %62 {strides = array<i32>} : memref<1x16x32xbf16, #tpu.memory_space<vmem>>, vector<1x16x32xbf16>,
      %c0_34 = arith.constant 0 : index
      %c0_35 = arith.constant 0 : index
      %63 = vector.load %arg13[%c0_34, %c0_35] : memref<16x16xf32, #tpu.memory_space<vmem>>, vector<16x16xf32>
      %64 = vector.extract_strided_slice %63 {offsets = [0, 0], sizes = [16, 4], strides = [1, 1]} : vector<16x16xf32> to vector<16x4xf32>
      %65 = vector.extract_strided_slice %63 {offsets = [0, 4], sizes = [16, 4], strides = [1, 1]} : vector<16x16xf32> to vector<16x4xf32>
      %66 = arith.mulf %64, %23 : vector<16x4xf32>
      %67 = arith.mulf %65, %24 : vector<16x4xf32>
      %68 = arith.subf %66, %67 : vector<16x4xf32>
      %69 = arith.mulf %65, %23 : vector<16x4xf32>
      %70 = arith.mulf %64, %24 : vector<16x4xf32>
      %71 = arith.addf %69, %70 : vector<16x4xf32>
      %72 = vector.extract_strided_slice %63 {offsets = [0, 8], sizes = [16, 4], strides = [1, 1]} : vector<16x16xf32> to vector<16x4xf32>
      %73 = vector.extract_strided_slice %63 {offsets = [0, 12], sizes = [16, 4], strides = [1, 1]} : vector<16x16xf32> to vector<16x4xf32>
      %74 = arith.mulf %72, %23 : vector<16x4xf32>
      %75 = arith.mulf %73, %24 : vector<16x4xf32>
      %76 = arith.subf %74, %75 : vector<16x4xf32>
      %77 = arith.mulf %73, %23 : vector<16x4xf32>
      %78 = arith.mulf %72, %24 : vector<16x4xf32>
      %79 = arith.addf %77, %78 : vector<16x4xf32>
      %80 = tpu.concatenate %68, %71, %76, %79 in 1 : vector<16x4xf32>, vector<16x4xf32>, vector<16x4xf32>, vector<16x4xf32> -> vector<16x16xf32>
      %81 = arith.truncf %80 : vector<16x16xf32> to vector<16x16xbf16>
      %c0_36 = arith.constant 0 : index
      %c0_37 = arith.constant 0 : index
      %c0_38 = arith.constant 0 : index
      %82 = vector.load %arg10[%c0_36, %c0_37, %c0_38] : memref<1x16x16xbf16, #tpu.memory_space<vmem>>, vector<1x16x16xbf16>
      %83 = vector.shape_cast %82 : vector<1x16x16xbf16> to vector<16x16xbf16>
      %84 = vector.shape_cast %81 : vector<16x16xbf16> to vector<1x16x16xbf16>
      tpu.vector_store %arg10[%c0_36, %c0_37, %c0_38], %84 {strides = array<i32>} : memref<1x16x16xbf16, #tpu.memory_space<vmem>>, vector<1x16x16xbf16>,
      %c0_39 = arith.constant 0 : index
      %c0_40 = arith.constant 0 : index
      %85 = vector.load %arg14[%c0_39, %c0_40] : memref<16x16xf32, #tpu.memory_space<vmem>>, vector<16x16xf32>
      %86 = arith.truncf %85 : vector<16x16xf32> to vector<16x16xbf16>
      %c0_41 = arith.constant 0 : index
      %c0_42 = arith.constant 0 : index
      %c0_43 = arith.constant 0 : index
      %87 = vector.load %arg11[%c0_41, %c0_42, %c0_43] : memref<1x16x16xbf16, #tpu.memory_space<vmem>>, vector<1x16x16xbf16>
      %88 = vector.shape_cast %87 : vector<1x16x16xbf16> to vector<16x16xbf16>
      %89 = vector.shape_cast %86 : vector<16x16xbf16> to vector<1x16x16xbf16>
      tpu.vector_store %arg11[%c0_41, %c0_42, %c0_43], %89 {strides = array<i32>} : memref<1x16x16xbf16, #tpu.memory_space<vmem>>, vector<1x16x16xbf16>,
    } else {
    }
    return
  }
  func.func @transform_0(%arg0: i32, %arg1: i32, %arg2: i32) -> (i32, i32, i32) {
    %c0_i32 = arith.constant 0 : i32
    return %arg0, %arg1, %arg2 : i32, i32, i32
  }
  func.func @transform_1(%arg0: i32, %arg1: i32, %arg2: i32) -> (i32, i32) {
    %c0_i32 = arith.constant 0 : i32
    %c0_i32_0 = arith.constant 0 : i32
    return %c0_i32, %arg2 : i32, i32
  }
  func.func @transform_2(%arg0: i32, %arg1: i32, %arg2: i32) -> (i32, i32) {
    %c0_i32 = arith.constant 0 : i32
    %c0_i32_0 = arith.constant 0 : i32
    return %c0_i32, %arg2 : i32, i32
  }
  func.func @transform_3(%arg0: i32, %arg1: i32, %arg2: i32) -> (i32, i32) {
    %c0_i32 = arith.constant 0 : i32
    %c0_i32_0 = arith.constant 0 : i32
    return %c0_i32, %arg2 : i32, i32
  }
  func.func @transform_4(%arg0: i32, %arg1: i32, %arg2: i32) -> (i32, i32) {
    %c0_i32 = arith.constant 0 : i32
    %c0_i32_0 = arith.constant 0 : i32
    return %arg1, %c0_i32 : i32, i32
  }
  func.func @transform_5(%arg0: i32, %arg1: i32, %arg2: i32) -> (i32, i32) {
    %c0_i32 = arith.constant 0 : i32
    %c0_i32_0 = arith.constant 0 : i32
    return %arg1, %c0_i32 : i32, i32
  }
  func.func @transform_6(%arg0: i32, %arg1: i32, %arg2: i32) -> (i32, i32, i32) {
    %c0_i32 = arith.constant 0 : i32
    %c0_i32_0 = arith.constant 0 : i32
    return %arg0, %arg1, %c0_i32 : i32, i32, i32
  }
  func.func @transform_7(%arg0: i32, %arg1: i32, %arg2: i32) -> (i32, i32, i32) {
    %c0_i32 = arith.constant 0 : i32
    %c0_i32_0 = arith.constant 0 : i32
    return %arg0, %arg1, %c0_i32 : i32, i32, i32
  }
  func.func @transform_8(%arg0: i32, %arg1: i32, %arg2: i32) -> (i32, i32, i32) {
    %c0_i32 = arith.constant 0 : i32
    %c0_i32_0 = arith.constant 0 : i32
    return %arg0, %arg1, %c0_i32 : i32, i32, i32
  }
}

</mosaic_0001>

<llo_original>
// kernel: tpu_custom_call.1
$region0: #{tpu_custom_call.1}
  #allocation0 [shape = 'u32[]', space=smem, size = 0x4, offset = 0x4, fixed_abs, tag = 'smem constant byte address 0x4 - core index']
  #allocation1 [shape = 'u32[144,128]{1,0:T(1,128)}', space=vmem, size = 0x12000, scoped, tag = 'internal scratch']
  #allocation2 [shape = 'f32[16,32]{1,0:T(8,128)}', space=vmem, size = 0x2000, scoped, tag = 'scratch operand']
  #allocation3 [shape = 'f32[16,16]{1,0:T(8,128)}', space=vmem, size = 0x2000, scoped, tag = 'scratch operand']
  #allocation4 [shape = 'f32[16,16]{1,0:T(8,128)}', space=vmem, size = 0x2000, scoped, tag = 'scratch operand']
  %s0 = inlined_call_operand.vmem [shape: bf16[2,16,32], index: 0, kind: input, shape index: {}]
  %s1 = inlined_call_operand.vmem [shape: bf16[32,32], index: 1, kind: input, shape index: {}]
  %s2 = inlined_call_operand.vmem [shape: bf16[16,32], index: 2, kind: input, shape index: {}]
  %s3 = inlined_call_operand.hbm [shape: bf16[16,32], index: 3, kind: input, shape index: {}]
  %s4 = inlined_call_operand.vmem [shape: f32[16,4], index: 4, kind: input, shape index: {}]
  %s5 = inlined_call_operand.vmem [shape: f32[16,4], index: 5, kind: input, shape index: {}]
  %s6 = inlined_call_operand.hbm [shape: bf16[2,16,32], index: 6, kind: output, shape index: {0}]
  %s7 = inlined_call_operand.hbm [shape: bf16[2,16,16], index: 7, kind: output, shape index: {1}]
  %s8 = inlined_call_operand.hbm [shape: bf16[2,16,16], index: 8, kind: output, shape index: {2}]
  %9 = xla_tuple %s6, %s7, %s8
  %s10 = sld [smem:[#allocation0]]
  $region85: #{tpu_custom_call.1} parent=0
    _
  %s12 = ssub.s32 1, %s10
  %s13 = scalar_select 0, %s12, %s10
  $region1: #{tpu_custom_call.1} parent=0
    #allocation5 [shape = 'u8[4096]{0}', space=vmem, size = 0x1000, scoped, tag = 'input window, operand 3, single buffered']
    #allocation6 [shape = 's32[2]{0}', space=sflag, size = 0x8, scoped, tag = 'scoped memory for tpu_custom_call.1']
    #allocation7 [shape = 's32[2]{0}', space=sflag, size = 0x8, scoped, tag = 'scoped memory for tpu_custom_call.1']
    #allocation8 [shape = 'u8[8192]{0}', space=vmem, size = 0x2000, scoped, tag = 'output window, operand 0']
    #allocation9 [shape = 'u8[8192]{0}', space=vmem, size = 0x2000, scoped, tag = 'output window, operand 1']
    #allocation10 [shape = 's32[2]{0}', space=sflag, size = 0x8, scoped, tag = 'scoped memory for tpu_custom_call.1']
    #allocation11 [shape = 'u8[8192]{0}', space=vmem, size = 0x2000, scoped, tag = 'output window, operand 2']
    %14 = vsyncpa [#allocation6], 0
    %15 = vsyncpa [#allocation7], 0
    %s16 = scalar_lea.sflag [#allocation7], 1
    %17 = vsyncpa %s16, 0
    %18 = vsyncpa [#allocation10], 0
    %s19 = scalar_lea.sflag [#allocation10], 1
    %20 = vsyncpa %s19, 0
    loop: start=0, step=1, limit=4
    $region2: #{tpu_custom_call.1} parent=1 // loop_pre_header
      _
    $region3: #{tpu_custom_call.1} parent=1 // loop_header
      %s22 = sphi 0, %s26
      %p23 = scmp.ge.s32.totalorder %s22, 4
      %s29 = sphi 0, %s48
      %s30 = sphi 0, %s44
      %s31 = sphi 0, %s40
      %s32 = sphi 0, %s29
      %s33 = sphi 0, %s30
      %s34 = sphi 0, %s31
      %s35 = sphi 0, %s32
      %s36 = sphi 0, %s33
      %s37 = sphi 0, %s34
      %s55 = sphi 0, %s57
      %s58 = sphi 0, %s55
      %s59 = sphi 0, %s58
      %s75 = sphi 0, %s59
      %s81 = sphi 0, %s83
      %s84 = sphi 0, %s81
      %s85 = sphi 0, %s84
      %s101 = sphi 0, %s85
      %s107 = sphi 0, %s109
      %s110 = sphi 0, %s107
      %s111 = sphi 0, %s110
      %s127 = sphi 0, %s111
      %s133 = sphi 0, %s135
      %s136 = sphi 0, %s133
      %s137 = sphi 0, %s136
      %s153 = sphi 0, %s137
      %s159 = sphi 0, %s161
      %s162 = sphi 0, %s159
      %s163 = sphi 0, %s162
      %s179 = sphi 0, %s163
      %s185 = sphi 0, %s187
      %s188 = sphi 0, %s185
      %s189 = sphi 0, %s188
      %s205 = sphi 0, %s189
      %s213 = sphi 0, %s215
      %s216 = sphi 0, %s213
      %s217 = sphi 0, %s216
      %s233 = sphi 0, %s217
      %s241 = sphi 0, %s243
      %s244 = sphi 0, %s241
      %s245 = sphi 0, %s244
      %s261 = sphi 0, %s245
      %s269 = sphi 0, %s271
      %s272 = sphi 0, %s269
      %s273 = sphi 0, %s272
      %s289 = sphi 0, %s273
    $region4: #{tpu_custom_call.1} parent=1 // loop_header_branch
      %25 = sbr.rel (%p23) target = $region8
    $region5: #{tpu_custom_call.1} parent=1 // loop_body
      %s27 = ssub.s32 %s22, 1
      %s28 = ssub.s32 %s22, 2
      %s38 = sadd.s32 1, %s31
      %p39 = scmp.ge.s32.totalorder %s38, 1
      %s40 = scalar_select %p39, 0, %s38
      %s41 = sadd.s32 1, %s30
      %s42 = scalar_select %p39, %s41, %s30
      %p43 = scmp.ge.s32.totalorder %s42, 1
      %s44 = scalar_select %p43, 0, %s42
      %s45 = sadd.s32 1, %s29
      %s46 = scalar_select %p43, %s45, %s29
      %p47 = scmp.ge.s32.totalorder %s46, 2
      %s48 = scalar_select %p47, 0, %s46
      %s49 = ssub.s32 %s29, %s48
      %s50 = ssub.s32 %s30, %s44
      %s51 = sor.u32 %s49, %s50
      %s52 = ssub.s32 %s31, %s40
      %s53 = sor.u32 %s51, %s52
      %p54 = scmp.eq.s32.totalorder %s53, 0
      %s56 = sadd.s32 %s55, 1
      %s57 = scalar_select %p54, %s55, %s56
      %p60 = pneg %p54
      %p61 = scmp.eq.s32.totalorder %s22, 1
      %p62 = por %p60, %p61
      %p63 = scmp.ne.s32.totalorder %s55, %s58
      %p64 = scmp.eq.s32.totalorder %s22, 0
      %p65 = por %p63, %p64
      %p66 = scmp.ne.s32.totalorder %s55, %s58
      %p67 = scmp.eq.s32.totalorder %s27, 1
      %p68 = por %p66, %p67
      %p69 = scmp.ne.s32.totalorder %s58, %s59
      %p70 = scmp.eq.s32.totalorder %s27, 0
      %p71 = por %p69, %p70
      %p72 = scmp.ne.s32.totalorder %s58, %s59
      %p73 = scmp.eq.s32.totalorder %s28, 1
      %p74 = por %p72, %p73
      %p76 = scmp.ne.s32.totalorder %s59, %s75
      %p77 = scmp.eq.s32.totalorder %s28, 0
      %p78 = por %p76, %p77
      %s79 = ssub.s32 %s31, %s40
      %p80 = scmp.eq.s32.totalorder %s79, 0
      %s82 = sadd.s32 %s81, 1
      %s83 = scalar_select %p80, %s81, %s82
      %p86 = pneg %p80
      %p87 = scmp.eq.s32.totalorder %s22, 1
      %p88 = por %p86, %p87
      %p89 = scmp.ne.s32.totalorder %s81, %s84
      %p90 = scmp.eq.s32.totalorder %s22, 0
      %p91 = por %p89, %p90
      %p92 = scmp.ne.s32.totalorder %s81, %s84
      %p93 = scmp.eq.s32.totalorder %s27, 1
      %p94 = por %p92, %p93
      %p95 = scmp.ne.s32.totalorder %s84, %s85
      %p96 = scmp.eq.s32.totalorder %s27, 0
      %p97 = por %p95, %p96
      %p98 = scmp.ne.s32.totalorder %s84, %s85
      %p99 = scmp.eq.s32.totalorder %s28, 1
      %p100 = por %p98, %p99
      %p102 = scmp.ne.s32.totalorder %s85, %s101
      %p103 = scmp.eq.s32.totalorder %s28, 0
      %p104 = por %p102, %p103
      %s105 = ssub.s32 %s31, %s40
      %p106 = scmp.eq.s32.totalorder %s105, 0
      %s108 = sadd.s32 %s107, 1
      %s109 = scalar_select %p106, %s107, %s108
      %p112 = pneg %p106
      %p113 = scmp.eq.s32.totalorder %s22, 1
      %p114 = por %p112, %p113
      %p115 = scmp.ne.s32.totalorder %s107, %s110
      %p116 = scmp.eq.s32.totalorder %s22, 0
      %p117 = por %p115, %p116
      %p118 = scmp.ne.s32.totalorder %s107, %s110
      %p119 = scmp.eq.s32.totalorder %s27, 1
      %p120 = por %p118, %p119
      %p121 = scmp.ne.s32.totalorder %s110, %s111
      %p122 = scmp.eq.s32.totalorder %s27, 0
      %p123 = por %p121, %p122
      %p124 = scmp.ne.s32.totalorder %s110, %s111
      %p125 = scmp.eq.s32.totalorder %s28, 1
      %p126 = por %p124, %p125
      %p128 = scmp.ne.s32.totalorder %s111, %s127
      %p129 = scmp.eq.s32.totalorder %s28, 0
      %p130 = por %p128, %p129
      %s131 = ssub.s32 %s31, %s40
      %p132 = scmp.eq.s32.totalorder %s131, 0
      %s134 = sadd.s32 %s133, 1
      %s135 = scalar_select %p132, %s133, %s134
      %p138 = pneg %p132
      %p139 = scmp.eq.s32.totalorder %s22, 1
      %p140 = por %p138, %p139
      %p141 = scmp.ne.s32.totalorder %s133, %s136
      %p142 = scmp.eq.s32.totalorder %s22, 0
      %p143 = por %p141, %p142
      %p144 = scmp.ne.s32.totalorder %s133, %s136
      %p145 = scmp.eq.s32.totalorder %s27, 1
      %p146 = por %p144, %p145
      %p147 = scmp.ne.s32.totalorder %s136, %s137
      %p148 = scmp.eq.s32.totalorder %s27, 0
      %p149 = por %p147, %p148
      %p150 = scmp.ne.s32.totalorder %s136, %s137
      %p151 = scmp.eq.s32.totalorder %s28, 1
      %p152 = por %p150, %p151
      %p154 = scmp.ne.s32.totalorder %s137, %s153
      %p155 = scmp.eq.s32.totalorder %s28, 0
      %p156 = por %p154, %p155
      %s157 = ssub.s32 %s30, %s44
      %p158 = scmp.eq.s32.totalorder %s157, 0
      %s160 = sadd.s32 %s159, 1
      %s161 = scalar_select %p158, %s159, %s160
      %p164 = pneg %p158
      %p165 = scmp.eq.s32.totalorder %s22, 1
      %p166 = por %p164, %p165
      %p167 = scmp.ne.s32.totalorder %s159, %s162
      %p168 = scmp.eq.s32.totalorder %s22, 0
      %p169 = por %p167, %p168
      %p170 = scmp.ne.s32.totalorder %s159, %s162
      %p171 = scmp.eq.s32.totalorder %s27, 1
      %p172 = por %p170, %p171
      %p173 = scmp.ne.s32.totalorder %s162, %s163
      %p174 = scmp.eq.s32.totalorder %s27, 0
      %p175 = por %p173, %p174
      %p176 = scmp.ne.s32.totalorder %s162, %s163
      %p177 = scmp.eq.s32.totalorder %s28, 1
      %p178 = por %p176, %p177
      %p180 = scmp.ne.s32.totalorder %s163, %s179
      %p181 = scmp.eq.s32.totalorder %s28, 0
      %p182 = por %p180, %p181
      %s183 = ssub.s32 %s30, %s44
      %p184 = scmp.eq.s32.totalorder %s183, 0
      %s186 = sadd.s32 %s185, 1
      %s187 = scalar_select %p184, %s185, %s186
      %p190 = pneg %p184
      %p191 = scmp.eq.s32.totalorder %s22, 1
      %p192 = por %p190, %p191
      %p193 = scmp.ne.s32.totalorder %s185, %s188
      %p194 = scmp.eq.s32.totalorder %s22, 0
      %p195 = por %p193, %p194
      %p196 = scmp.ne.s32.totalorder %s185, %s188
      %p197 = scmp.eq.s32.totalorder %s27, 1
      %p198 = por %p196, %p197
      %p199 = scmp.ne.s32.totalorder %s188, %s189
      %p200 = scmp.eq.s32.totalorder %s27, 0
      %p201 = por %p199, %p200
      %p202 = scmp.ne.s32.totalorder %s188, %s189
      %p203 = scmp.eq.s32.totalorder %s28, 1
      %p204 = por %p202, %p203
      %p206 = scmp.ne.s32.totalorder %s189, %s205
      %p207 = scmp.eq.s32.totalorder %s28, 0
      %p208 = por %p206, %p207
      %s209 = ssub.s32 %s29, %s48
      %s210 = ssub.s32 %s30, %s44
      %s211 = sor.u32 %s209, %s210
      %p212 = scmp.eq.s32.totalorder %s211, 0
      %s214 = sadd.s32 %s213, 1
      %s215 = scalar_select %p212, %s213, %s214
      %p218 = pneg %p212
      %p219 = scmp.eq.s32.totalorder %s22, 1
      %p220 = por %p218, %p219
      %p221 = scmp.ne.s32.totalorder %s213, %s216
      %p222 = scmp.eq.s32.totalorder %s22, 0
      %p223 = por %p221, %p222
      %p224 = scmp.ne.s32.totalorder %s213, %s216
      %p225 = scmp.eq.s32.totalorder %s27, 1
      %p226 = por %p224, %p225
      %p227 = scmp.ne.s32.totalorder %s216, %s217
      %p228 = scmp.eq.s32.totalorder %s27, 0
      %p229 = por %p227, %p228
      %p230 = scmp.ne.s32.totalorder %s216, %s217
      %p231 = scmp.eq.s32.totalorder %s28, 1
      %p232 = por %p230, %p231
      %p234 = scmp.ne.s32.totalorder %s217, %s233
      %p235 = scmp.eq.s32.totalorder %s28, 0
      %p236 = por %p234, %p235
      %s237 = ssub.s32 %s29, %s48
      %s238 = ssub.s32 %s30, %s44
      %s239 = sor.u32 %s237, %s238
      %p240 = scmp.eq.s32.totalorder %s239, 0
      %s242 = sadd.s32 %s241, 1
      %s243 = scalar_select %p240, %s241, %s242
      %p246 = pneg %p240
      %p247 = scmp.eq.s32.totalorder %s22, 1
      %p248 = por %p246, %p247
      %p249 = scmp.ne.s32.totalorder %s241, %s244
      %p250 = scmp.eq.s32.totalorder %s22, 0
      %p251 = por %p249, %p250
      %p252 = scmp.ne.s32.totalorder %s241, %s244
      %p253 = scmp.eq.s32.totalorder %s27, 1
      %p254 = por %p252, %p253
      %p255 = scmp.ne.s32.totalorder %s244, %s245
      %p256 = scmp.eq.s32.totalorder %s27, 0
      %p257 = por %p255, %p256
      %p258 = scmp.ne.s32.totalorder %s244, %s245
      %p259 = scmp.eq.s32.totalorder %s28, 1
      %p260 = por %p258, %p259
      %p262 = scmp.ne.s32.totalorder %s245, %s261
      %p263 = scmp.eq.s32.totalorder %s28, 0
      %p264 = por %p262, %p263
      %s265 = ssub.s32 %s29, %s48
      %s266 = ssub.s32 %s30, %s44
      %s267 = sor.u32 %s265, %s266
      %p268 = scmp.eq.s32.totalorder %s267, 0
      %s270 = sadd.s32 %s269, 1
      %s271 = scalar_select %p268, %s269, %s270
      %p274 = pneg %p268
      %p275 = scmp.eq.s32.totalorder %s22, 1
      %p276 = por %p274, %p275
      %p277 = scmp.ne.s32.totalorder %s269, %s272
      %p278 = scmp.eq.s32.totalorder %s22, 0
      %p279 = por %p277, %p278
      %p280 = scmp.ne.s32.totalorder %s269, %s272
      %p281 = scmp.eq.s32.totalorder %s27, 1
      %p282 = por %p280, %p281
      %p283 = scmp.ne.s32.totalorder %s272, %s273
      %p284 = scmp.eq.s32.totalorder %s27, 0
      %p285 = por %p283, %p284
      %p286 = scmp.ne.s32.totalorder %s272, %s273
      %p287 = scmp.eq.s32.totalorder %s28, 1
      %p288 = por %p286, %p287
      %p290 = scmp.ne.s32.totalorder %s273, %s289
      %p291 = scmp.eq.s32.totalorder %s28, 0
      %p292 = por %p290, %p291
      %p293 = scmp.le.s32.totalorder 1, %s22
      %p294 = scmp.lt.s32.totalorder %s22, 3
      %p295 = pnand %p293, %p294
      %p296 = pneg %p295
      // Predicated region
      $region9: #{tpu_custom_call.1} parent=5 // pred_check
        _
      $region10: #{tpu_custom_call.1} parent=5 // pred_check_branch
        %298 = sbr.rel (%p295) target = $region12
      $region11: #{tpu_custom_call.1} parent=5 // pred_region
        %s299 = ssub.s32 %s22, 1
        // Predicated region
        $region13: #{tpu_custom_call.1} parent=11 // pred_check
          %p300 = pneg %p97
        $region14: #{tpu_custom_call.1} parent=11 // pred_check_branch
          %302 = sbr.rel (%p300) target = $region16
        $region15: #{tpu_custom_call.1} parent=11 // pred_region
          %p303 = scmp.lt.s32.totalorder %s34, 0
          %s304 = scalar_select %p303, %s34, 0
          %s305 = smul.addr %s304, 4
          %s306 = scalar_lea.vmem %s1, %s305
        $region16: #{tpu_custom_call.1} parent=11 // pred_fallthru
          _
        // Predicated region
        $region17: #{tpu_custom_call.1} parent=11 // pred_check
          %p307 = pneg %p123
        $region18: #{tpu_custom_call.1} parent=11 // pred_check_branch
          %309 = sbr.rel (%p307) target = $region20
        $region19: #{tpu_custom_call.1} parent=11 // pred_region
          %p310 = scmp.lt.s32.totalorder %s34, 0
          %s311 = scalar_select %p310, %s34, 0
          %s312 = smul.addr %s311, 4
          %s313 = scalar_lea.vmem %s2, %s312
        $region20: #{tpu_custom_call.1} parent=11 // pred_fallthru
          _
        // Predicated region
        $region21: #{tpu_custom_call.1} parent=11 // pred_check
          %p314 = pneg %p149
        $region22: #{tpu_custom_call.1} parent=11 // pred_check_branch
          %316 = sbr.rel (%p314) target = $region24
        $region23: #{tpu_custom_call.1} parent=11 // pred_region
          %s318 = ssub.s32 128, 128
          %319 = vsyncadd [#allocation6], %s318
          %s320 = smul.addr %s34, 64
          %s321 = scalar_lea.hbm %s3, %s320
          %s322 = sshll.u32 [#allocation5], 4
          %s323 = int_to_ptr.vmem [resolvable:$true] %s322
          %328 = dma.hbm_to_vmem [thread:$0]  %s321, 128, %s323, [#allocation6], 64, 64, 4
        $region24: #{tpu_custom_call.1} parent=11 // pred_fallthru
          _
        // Predicated region
        $region25: #{tpu_custom_call.1} parent=11 // pred_check
          %p329 = pneg %p175
        $region26: #{tpu_custom_call.1} parent=11 // pred_check_branch
          %331 = sbr.rel (%p329) target = $region28
        $region27: #{tpu_custom_call.1} parent=11 // pred_region
          %s332 = smul.u32 2, %s33
          %p333 = scmp.lt.s32.totalorder %s332, 1
          %s334 = scalar_select %p333, %s332, 1
          %s335 = smul.addr %s334, 8
          %s336 = scalar_lea.vmem %s4, %s335
          %s337 = smul.u32 2, %s33
        $region28: #{tpu_custom_call.1} parent=11 // pred_fallthru
          _
        // Predicated region
        $region29: #{tpu_custom_call.1} parent=11 // pred_check
          %p338 = pneg %p201
        $region30: #{tpu_custom_call.1} parent=11 // pred_check_branch
          %340 = sbr.rel (%p338) target = $region32
        $region31: #{tpu_custom_call.1} parent=11 // pred_region
          %s341 = smul.u32 2, %s33
          %p342 = scmp.lt.s32.totalorder %s341, 1
          %s343 = scalar_select %p342, %s341, 1
          %s344 = smul.addr %s343, 8
          %s345 = scalar_lea.vmem %s5, %s344
          %s346 = smul.u32 2, %s33
        $region32: #{tpu_custom_call.1} parent=11 // pred_fallthru
          _
      $region12: #{tpu_custom_call.1} parent=5 // pred_fallthru
        _
      %p347 = scmp.lt.s32.totalorder %s22, 2
      // Predicated region
      $region33: #{tpu_custom_call.1} parent=5 // pred_check
        %p348 = pneg %p347
      $region34: #{tpu_custom_call.1} parent=5 // pred_check_branch
        %350 = sbr.rel (%p348) target = $region36
      $region35: #{tpu_custom_call.1} parent=5 // pred_region
        // Predicated region
        $region37: #{tpu_custom_call.1} parent=35 // pred_check
          %p351 = pneg %p65
        $region38: #{tpu_custom_call.1} parent=35 // pred_check_branch
          %353 = sbr.rel (%p351) target = $region40
        $region39: #{tpu_custom_call.1} parent=35 // pred_region
          %s354 = smul.u32 2, %s30
          %p355 = scmp.lt.s32.totalorder %s29, 1
          %s356 = scalar_select %p355, %s29, 1
          %p357 = scmp.lt.s32.totalorder %s354, 1
          %s358 = scalar_select %p357, %s354, 1
          %p359 = scmp.lt.s32.totalorder %s31, 0
          %s360 = scalar_select %p359, %s31, 0
          %s361 = sadd.s32 %s360, %s358
          %s362 = smul.addr %s356, 2
          %s363 = sadd.s32 %s361, %s362
          %s364 = smul.addr %s363, 4
          %s365 = scalar_lea.vmem %s0, %s364
          %s366 = smul.u32 2, %s30
        $region40: #{tpu_custom_call.1} parent=35 // pred_fallthru
          _
      $region36: #{tpu_custom_call.1} parent=5 // pred_fallthru
        _
      %p367 = scmp.le.s32.totalorder 1, %s22
      %p368 = scmp.lt.s32.totalorder %s22, 3
      %p369 = pnand %p367, %p368
      %p370 = pneg %p369
      // Predicated region
      $region41: #{tpu_custom_call.1} parent=5 // pred_check
        _
      $region42: #{tpu_custom_call.1} parent=5 // pred_check_branch
        %372 = sbr.rel (%p369) target = $region44
      $region43: #{tpu_custom_call.1} parent=5 // pred_region
        %s373 = ssub.s32 %s22, 1
        // Predicated region
        $region45: #{tpu_custom_call.1} parent=43 // pred_check
          %p374 = pneg %p149
        $region46: #{tpu_custom_call.1} parent=43 // pred_check_branch
          %376 = sbr.rel (%p374) target = $region48
        $region47: #{tpu_custom_call.1} parent=43 // pred_region
          %377 = dma.done [#allocation6], 128
        $region48: #{tpu_custom_call.1} parent=43 // pred_fallthru
          _
        %s378 = smul.u32 2, %s33
        %p379 = scmp.lt.s32.totalorder %s32, 1
        %s380 = scalar_select %p379, %s32, 1
        %p381 = scmp.lt.s32.totalorder %s378, 1
        %s382 = scalar_select %p381, %s378, 1
        %p383 = scmp.lt.s32.totalorder %s34, 0
        %s384 = scalar_select %p383, %s34, 0
        %s385 = sadd.s32 %s384, %s382
        %s386 = smul.addr %s380, 2
        %s387 = sadd.s32 %s385, %s386
        %s388 = smul.addr %s387, 4
        %s389 = scalar_lea.vmem %s0, %s388
        %p390 = pneg %p71
        %p391 = pneg %p68
        %p392 = scmp.lt.s32.totalorder %s34, 0
        %s393 = scalar_select %p392, %s34, 0
        %s394 = smul.addr %s393, 4
        %s395 = scalar_lea.vmem %s1, %s394
        %p396 = pneg %p97
        %p397 = pneg %p94
        %p398 = scmp.lt.s32.totalorder %s34, 0
        %s399 = scalar_select %p398, %s34, 0
        %s400 = smul.addr %s399, 4
        %s401 = scalar_lea.vmem %s2, %s400
        %p402 = pneg %p123
        %p403 = pneg %p120
        %p404 = pneg %p149
        %p405 = pneg %p146
        %s406 = smul.u32 2, %s33
        %p407 = scmp.lt.s32.totalorder %s406, 1
        %s408 = scalar_select %p407, %s406, 1
        %s409 = smul.addr %s408, 8
        %s410 = scalar_lea.vmem %s4, %s409
        %p411 = pneg %p175
        %p412 = pneg %p172
        %s413 = smul.u32 2, %s33
        %p414 = scmp.lt.s32.totalorder %s413, 1
        %s415 = scalar_select %p414, %s413, 1
        %s416 = smul.addr %s415, 8
        %s417 = scalar_lea.vmem %s5, %s416
        %p418 = pneg %p201
        %p419 = pneg %p198
        %p420 = pneg %p229
        %p421 = pneg %p226
        %s422 = sand.u32 %s216, 1
        %s423 = scalar_lea.sflag [#allocation7], %s422
        %s424 = sand.u32 %s216, 1
        %s425 = smul.addr %s424, 8
        %s426 = scalar_lea.vmem [#allocation8], %s425
        %p427 = pneg %p257
        %p428 = pneg %p254
        %s429 = sand.u32 %s27, 1
        %s430 = scalar_lea.sflag [#allocation10], %s429
        %s431 = sand.u32 %s244, 1
        %s432 = smul.addr %s431, 8
        %s433 = scalar_lea.vmem [#allocation9], %s432
        %p434 = pneg %p285
        %p435 = pneg %p282
        %s436 = sand.u32 %s27, 1
        %s437 = scalar_lea.sflag [#allocation10], %s436
        %s438 = sand.u32 %s272, 1
        %s439 = smul.addr %s438, 8
        %s440 = scalar_lea.vmem [#allocation11], %s439
        %s441 = smul.u32 2, %s33
        %p442 = scmp.lt.s32.totalorder %s32, 1
        %s443 = scalar_select %p442, %s32, 1
        %p444 = scmp.lt.s32.totalorder %s441, 1
        %s445 = scalar_select %p444, %s441, 1
        %p446 = scmp.lt.s32.totalorder %s34, 0
        %s447 = scalar_select %p446, %s34, 0
        %s448 = sadd.s32 %s447, %s445
        %s449 = smul.addr %s443, 2
        %s450 = sadd.s32 %s448, %s449
        %s451 = smul.addr %s450, 4
        %s452 = scalar_lea.vmem %s0, %s451
        %s453 = smul.u32 2, %s33
        %p454 = scmp.lt.s32.totalorder %s34, 0
        %s455 = scalar_select %p454, %s34, 0
        %s456 = smul.addr %s455, 4
        %s457 = scalar_lea.vmem %s1, %s456
        %p458 = scmp.lt.s32.totalorder %s34, 0
        %s459 = scalar_select %p458, %s34, 0
        %s460 = smul.addr %s459, 4
        %s461 = scalar_lea.vmem %s2, %s460
        %s462 = smul.u32 2, %s33
        %p463 = scmp.lt.s32.totalorder %s462, 1
        %s464 = scalar_select %p463, %s462, 1
        %s465 = smul.addr %s464, 8
        %s466 = scalar_lea.vmem %s4, %s465
        %s467 = smul.u32 2, %s33
        %s468 = smul.u32 2, %s33
        %p469 = scmp.lt.s32.totalorder %s468, 1
        %s470 = scalar_select %p469, %s468, 1
        %s471 = smul.addr %s470, 8
        %s472 = scalar_lea.vmem %s5, %s471
        %s473 = smul.u32 2, %s33
        %s474 = smul.u32 2, %s33
        %s475 = smul.u32 2, %s33
        %s476 = smul.u32 2, %s33
        %p478 = scmp.eq.s32.totalorder %s34, 0
        // Predicated region
        $region49: #{tpu_custom_call.1} parent=43 // pred_check
          %p479 = pneg %p478
        $region50: #{tpu_custom_call.1} parent=43 // pred_check_branch
          %481 = sbr.rel (%p479) target = $region52
        $region51: #{tpu_custom_call.1} parent=43 // pred_region
          %vm482 = vcmask 261120
          %483 = vst.msk [vmem:[#allocation2] sm:$0xff] %vm482, 0.0
          %484 = vst.msk [vmem:[#allocation2 + $0x8] sm:$0xff] %vm482, 0.0
          %vm485 = vcmask 130048
          %486 = vst.msk [vmem:[#allocation3] sm:$0xff] %vm485, 0.0
          %487 = vst.msk [vmem:[#allocation3 + $0x8] sm:$0xff] %vm485, 0.0
          %488 = vst.msk [vmem:[#allocation4] sm:$0xff] %vm485, 0.0
          %489 = vst.msk [vmem:[#allocation4 + $0x8] sm:$0xff] %vm485, 0.0
        $region52: #{tpu_custom_call.1} parent=43 // pred_fallthru
          _
        %v490 = vld [vmem:[%s452] sm:$0xf]
        %v491 = vld [vmem:[%s452 + $0x4] sm:$0xf]
        %v492 = vld [vmem:[#allocation2] sm:$0xff]
        %v493 = vld [vmem:[#allocation2 + $0x8] sm:$0xff]
        %v494 = vld [vmem:[%s457] sm:$0xf]
        %v495 = vld [vmem:[%s457 + $0x4] sm:$0xf]
        %v496 = vld [vmem:[%s457 + $0x8] sm:$0xf]
        %v497 = vld [vmem:[%s457 + $0xc] sm:$0xf]
        %v500 = vunpack.c.l.b16 %v490
        %v501 = vunpack.c.l.b16 %v491
        %v502 = vpack.c.b16 %v501, %v500
        %v507 = vunpack.c.l.b16 %v494
        %v508 = vunpack.c.l.b16 %v495
        %v509 = vunpack.c.l.b16 %v496
        %v510 = vunpack.c.l.b16 %v497
        %v511 = vpack.c.b16 %v508, %v507
        %v512 = vpack.c.b16 %v510, %v509
        %vm513 = vcmask 261120
        %v515 = vsel %vm513, %v502, 0
        %v518 = vsel %vm513, %v511, 0
        %v521 = vsel %vm513, %v512, 0
        %523 = vmatprep.subr.bf16.mxu0 0
        %524 = vmatpush1.bf16.xpose.msra.mxu0 0
        %525 = vmatprep.subr.bf16.mxu0 0
        %526 = vmatpush1.bf16.xpose.msra.mxu0 0
        %527 = vmatprep.subr.bf16.mxu0 0
        %528 = vmatpush1.bf16.xpose.msra.mxu0 0
        %529 = vmatprep.subr.bf16.mxu0 0
        %530 = vmatpush1.bf16.xpose.msra.mxu0 0
        %531 = vmatprep.subr.bf16.mxu0 0
        %532 = vmatpush1.bf16.xpose.msra.mxu0 0
        %533 = vmatprep.subr.bf16.mxu0 0
        %534 = vmatpush1.bf16.xpose.msra.mxu0 0
        %535 = vmatprep.subr.bf16.mxu0 0
        %536 = vmatpush1.bf16.xpose.msra.mxu0 %v521
        %537 = vmatprep.subr.bf16.mxu0 0
        %538 = vmatpush1.bf16.xpose.msra.mxu0 %v518
        %539 = vmatprep.subr.bf16.mxu0 0
        %540 = vmatpush2.bf16.xpose.msra.mxu0 0
        %541 = vmatprep.subr.bf16.mxu0 0
        %542 = vmatpush2.bf16.xpose.msra.mxu0 0
        %543 = vmatprep.subr.bf16.mxu0 0
        %544 = vmatpush2.bf16.xpose.msra.mxu0 0
        %545 = vmatprep.subr.bf16.mxu0 0
        %546 = vmatpush2.bf16.xpose.msra.mxu0 0
        %547 = vmatprep.subr.bf16.mxu0 0
        %548 = vmatpush2.bf16.xpose.msra.mxu0 0
        %549 = vmatprep.subr.bf16.mxu0 0
        %550 = vmatpush2.bf16.xpose.msra.mxu0 0
        %551 = vmatprep.subr.bf16.mxu0 0
        %552 = vmatpush2.bf16.xpose.msra.mxu0 0
        %553 = vmatprep.subr.bf16.mxu0 0
        %554 = vmatpush2.bf16.xpose.msra.mxu0 0
        %555 = vmatprep.mubr.bf16.mxu0 0
        %556 = vmatmul.mubr.bf16.gmra.mxu0 %v515
        %v557 = vpop.f32.mrf.mxu0
        %v558 = vadd.f32 0.0, %v557
        %v559 = vpop.f32.mrf.mxu0
        %v560 = vpop.f32.mrf.mxu0
        %v561 = vadd.f32 0.0, %v560
        %v562 = vpop.f32.mrf.mxu0
        %563 = vdwg.mxu0
        %v564 = vadd.f32 %v492, %v558
        %v565 = vadd.f32 %v493, %v561
        %566 = vst.msk [vmem:[#allocation2] sm:$0xff] %vm513, %v564
        %567 = vst.msk [vmem:[#allocation2 + $0x8] sm:$0xff] %vm513, %v565
        %v568 = vld [vmem:[#allocation3] sm:$0xff]
        %v569 = vld [vmem:[#allocation3 + $0x8] sm:$0xff]
        %v570 = vld [vmem:[%s461] sm:$0xf]
        %v571 = vld [vmem:[%s461 + $0x4] sm:$0xf]
        %v574 = vunpack.c.l.b16 %v570
        %v575 = vunpack.c.l.b16 %v571
        %v576 = vpack.c.b16 %v575, %v574
        %v578 = vsel %vm513, %v576, 0
        %580 = vmatprep.subr.bf16.mxu0 0
        %581 = vmatpush1.bf16.xpose.msra.mxu0 0
        %582 = vmatprep.subr.bf16.mxu0 0
        %583 = vmatpush1.bf16.xpose.msra.mxu0 0
        %584 = vmatprep.subr.bf16.mxu0 0
        %585 = vmatpush1.bf16.xpose.msra.mxu0 0
        %586 = vmatprep.subr.bf16.mxu0 0
        %587 = vmatpush1.bf16.xpose.msra.mxu0 0
        %588 = vmatprep.subr.bf16.mxu0 0
        %589 = vmatpush1.bf16.xpose.msra.mxu0 0
        %590 = vmatprep.subr.bf16.mxu0 0
        %591 = vmatpush1.bf16.xpose.msra.mxu0 0
        %592 = vmatprep.subr.bf16.mxu0 0
        %593 = vmatpush1.bf16.xpose.msra.mxu0 0
        %594 = vmatprep.subr.bf16.mxu0 0
        %595 = vmatpush1.bf16.xpose.msra.mxu0 %v578
        %596 = vmatprep.subr.bf16.mxu0 0
        %597 = vmatpush2.bf16.xpose.msra.mxu0 0
        %598 = vmatprep.subr.bf16.mxu0 0
        %599 = vmatpush2.bf16.xpose.msra.mxu0 0
        %600 = vmatprep.subr.bf16.mxu0 0
        %601 = vmatpush2.bf16.xpose.msra.mxu0 0
        %602 = vmatprep.subr.bf16.mxu0 0
        %603 = vmatpush2.bf16.xpose.msra.mxu0 0
        %604 = vmatprep.subr.bf16.mxu0 0
        %605 = vmatpush2.bf16.xpose.msra.mxu0 0
        %606 = vmatprep.subr.bf16.mxu0 0
        %607 = vmatpush2.bf16.xpose.msra.mxu0 0
        %608 = vmatprep.subr.bf16.mxu0 0
        %609 = vmatpush2.bf16.xpose.msra.mxu0 0
        %610 = vmatprep.subr.bf16.mxu0 0
        %611 = vmatpush2.bf16.xpose.msra.mxu0 0
        %612 = vmatprep.mubr.bf16.mxu0 0
        %613 = vmatmul.mubr.bf16.gmra.mxu0 %v515
        %v614 = vpop.f32.mrf.mxu0
        %v615 = vadd.f32 0.0, %v614
        %v616 = vpop.f32.mrf.mxu0
        %v617 = vpop.f32.mrf.mxu0
        %v618 = vadd.f32 0.0, %v617
        %v619 = vpop.f32.mrf.mxu0
        %620 = vdwg.mxu0
        %v621 = vadd.f32 %v568, %v615
        %v622 = vadd.f32 %v569, %v618
        %vm623 = vcmask 130048
        %624 = vst.msk [vmem:[#allocation3] sm:$0xff] %vm623, %v621
        %625 = vst.msk [vmem:[#allocation3 + $0x8] sm:$0xff] %vm623, %v622
        %v626 = vld [vmem:[#allocation4] sm:$0xff]
        %v627 = vld [vmem:[#allocation4 + $0x8] sm:$0xff]
        %v628 = vld [vmem:[#allocation5] sm:$0xf]
        %v629 = vld [vmem:[#allocation5 + $0x4] sm:$0xf]
        %v632 = vunpack.c.l.b16 %v628
        %v633 = vunpack.c.l.b16 %v629
        %v634 = vpack.c.b16 %v633, %v632
        %v636 = vsel %vm513, %v634, 0
        %638 = vmatprep.subr.bf16.mxu0 0
        %639 = vmatpush1.bf16.xpose.msra.mxu0 0
        %640 = vmatprep.subr.bf16.mxu0 0
        %641 = vmatpush1.bf16.xpose.msra.mxu0 0
        %642 = vmatprep.subr.bf16.mxu0 0
        %643 = vmatpush1.bf16.xpose.msra.mxu0 0
        %644 = vmatprep.subr.bf16.mxu0 0
        %645 = vmatpush1.bf16.xpose.msra.mxu0 0
        %646 = vmatprep.subr.bf16.mxu0 0
        %647 = vmatpush1.bf16.xpose.msra.mxu0 0
        %648 = vmatprep.subr.bf16.mxu0 0
        %649 = vmatpush1.bf16.xpose.msra.mxu0 0
        %650 = vmatprep.subr.bf16.mxu0 0
        %651 = vmatpush1.bf16.xpose.msra.mxu0 0
        %652 = vmatprep.subr.bf16.mxu0 0
        %653 = vmatpush1.bf16.xpose.msra.mxu0 %v636
        %654 = vmatprep.subr.bf16.mxu0 0
        %655 = vmatpush2.bf16.xpose.msra.mxu0 0
        %656 = vmatprep.subr.bf16.mxu0 0
        %657 = vmatpush2.bf16.xpose.msra.mxu0 0
        %658 = vmatprep.subr.bf16.mxu0 0
        %659 = vmatpush2.bf16.xpose.msra.mxu0 0
        %660 = vmatprep.subr.bf16.mxu0 0
        %661 = vmatpush2.bf16.xpose.msra.mxu0 0
        %662 = vmatprep.subr.bf16.mxu0 0
        %663 = vmatpush2.bf16.xpose.msra.mxu0 0
        %664 = vmatprep.subr.bf16.mxu0 0
        %665 = vmatpush2.bf16.xpose.msra.mxu0 0
        %666 = vmatprep.subr.bf16.mxu0 0
        %667 = vmatpush2.bf16.xpose.msra.mxu0 0
        %668 = vmatprep.subr.bf16.mxu0 0
        %669 = vmatpush2.bf16.xpose.msra.mxu0 0
        %670 = vmatprep.mubr.bf16.mxu0 0
        %671 = vmatmul.mubr.bf16.gmra.mxu0 %v515
        %v672 = vpop.f32.mrf.mxu0
        %v673 = vadd.f32 0.0, %v672
        %v674 = vpop.f32.mrf.mxu0
        %v675 = vpop.f32.mrf.mxu0
        %v676 = vadd.f32 0.0, %v675
        %v677 = vpop.f32.mrf.mxu0
        %678 = vdwg.mxu0
        %v679 = vadd.f32 %v626, %v673
        %v680 = vadd.f32 %v627, %v676
        %681 = vst.msk [vmem:[#allocation4] sm:$0xff] %vm623, %v679
        %682 = vst.msk [vmem:[#allocation4 + $0x8] sm:$0xff] %vm623, %v680
        // Predicated region
        $region53: #{tpu_custom_call.1} parent=43 // pred_check
          %p683 = pneg %p478
        $region54: #{tpu_custom_call.1} parent=43 // pred_check_branch
          %685 = sbr.rel (%p683) target = $region56
        $region55: #{tpu_custom_call.1} parent=43 // pred_region
          %v686 = vld [vmem:[%s466] sm:$0xff]
          %v687 = vld [vmem:[%s466 + $0x8] sm:$0xff]
          %v688 = vld [vmem:[%s472] sm:$0xff]
          %v689 = vld [vmem:[%s472 + $0x8] sm:$0xff]
          %v690 = vld [vmem:[#allocation2] sm:$0xff]
          %v691 = vld [vmem:[#allocation2 + $0x8] sm:$0xff]
          %v692 = vmul.f32 %v690, %v686
          %v693 = vmul.f32 %v691, %v687
          %696 = vrot.lane.b32.xlu0 %v688, 4
          %v697 = vpop.permute.xlu0 %696
          %698 = vrot.lane.b32.xlu0 %v689, 4
          %v699 = vpop.permute.xlu0 %698
          %v702 = vmul.f32 %v690, %v697
          %v703 = vmul.f32 %v691, %v699
          %706 = vrot.lane.b32.xlu0 %v702, 124
          %v707 = vpop.permute.xlu0 %706
          %708 = vrot.lane.b32.xlu0 %v703, 124
          %v709 = vpop.permute.xlu0 %708
          %v712 = vsub.f32 %v692, %v707
          %v713 = vsub.f32 %v693, %v709
          %716 = vrot.lane.b32.xlu0 %v686, 4
          %v717 = vpop.permute.xlu0 %716
          %718 = vrot.lane.b32.xlu0 %v687, 4
          %v719 = vpop.permute.xlu0 %718
          %v722 = vmul.f32 %v690, %v717
          %v723 = vmul.f32 %v691, %v719
          %v724 = vmul.f32 %v690, %v688
          %v725 = vmul.f32 %v691, %v689
          %728 = vrot.lane.b32.xlu0 %v724, 4
          %v729 = vpop.permute.xlu0 %728
          %730 = vrot.lane.b32.xlu0 %v725, 4
          %v731 = vpop.permute.xlu0 %730
          %v734 = vadd.f32 %v722, %v729
          %v735 = vadd.f32 %v723, %v731
          %736 = vrot.lane.b32.xlu0 %v686, 8
          %v737 = vpop.permute.xlu0 %736
          %738 = vrot.lane.b32.xlu0 %v687, 8
          %v739 = vpop.permute.xlu0 %738
          %v742 = vmul.f32 %v690, %v737
          %v743 = vmul.f32 %v691, %v739
          %744 = vrot.lane.b32.xlu0 %v688, 12
          %v745 = vpop.permute.xlu0 %744
          %746 = vrot.lane.b32.xlu0 %v689, 12
          %v747 = vpop.permute.xlu0 %746
          %v750 = vmul.f32 %v690, %v745
          %v751 = vmul.f32 %v691, %v747
          %754 = vrot.lane.b32.xlu0 %v750, 124
          %v755 = vpop.permute.xlu0 %754
          %756 = vrot.lane.b32.xlu0 %v751, 124
          %v757 = vpop.permute.xlu0 %756
          %v760 = vsub.f32 %v742, %v755
          %v761 = vsub.f32 %v743, %v757
          %762 = vrot.lane.b32.xlu0 %v686, 12
          %v763 = vpop.permute.xlu0 %762
          %764 = vrot.lane.b32.xlu0 %v687, 12
          %v765 = vpop.permute.xlu0 %764
          %v768 = vmul.f32 %v690, %v763
          %v769 = vmul.f32 %v691, %v765
          %770 = vrot.lane.b32.xlu0 %v688, 8
          %v771 = vpop.permute.xlu0 %770
          %772 = vrot.lane.b32.xlu0 %v689, 8
          %v773 = vpop.permute.xlu0 %772
          %v776 = vmul.f32 %v690, %v771
          %v777 = vmul.f32 %v691, %v773
          %780 = vrot.lane.b32.xlu0 %v776, 4
          %v781 = vpop.permute.xlu0 %780
          %782 = vrot.lane.b32.xlu0 %v777, 4
          %v783 = vpop.permute.xlu0 %782
          %v786 = vadd.f32 %v768, %v781
          %v787 = vadd.f32 %v769, %v783
          %788 = vrot.lane.b32.xlu0 %v686, 16
          %v789 = vpop.permute.xlu0 %788
          %790 = vrot.lane.b32.xlu0 %v687, 16
          %v791 = vpop.permute.xlu0 %790
          %v794 = vmul.f32 %v690, %v789
          %v795 = vmul.f32 %v691, %v791
          %796 = vrot.lane.b32.xlu0 %v688, 20
          %v797 = vpop.permute.xlu0 %796
          %798 = vrot.lane.b32.xlu0 %v689, 20
          %v799 = vpop.permute.xlu0 %798
          %v802 = vmul.f32 %v690, %v797
          %v803 = vmul.f32 %v691, %v799
          %806 = vrot.lane.b32.xlu0 %v802, 124
          %v807 = vpop.permute.xlu0 %806
          %808 = vrot.lane.b32.xlu0 %v803, 124
          %v809 = vpop.permute.xlu0 %808
          %v812 = vsub.f32 %v794, %v807
          %v813 = vsub.f32 %v795, %v809
          %814 = vrot.lane.b32.xlu0 %v686, 20
          %v815 = vpop.permute.xlu0 %814
          %816 = vrot.lane.b32.xlu0 %v687, 20
          %v817 = vpop.permute.xlu0 %816
          %v820 = vmul.f32 %v690, %v815
          %v821 = vmul.f32 %v691, %v817
          %822 = vrot.lane.b32.xlu0 %v688, 16
          %v823 = vpop.permute.xlu0 %822
          %824 = vrot.lane.b32.xlu0 %v689, 16
          %v825 = vpop.permute.xlu0 %824
          %v828 = vmul.f32 %v690, %v823
          %v829 = vmul.f32 %v691, %v825
          %832 = vrot.lane.b32.xlu0 %v828, 4
          %v833 = vpop.permute.xlu0 %832
          %834 = vrot.lane.b32.xlu0 %v829, 4
          %v835 = vpop.permute.xlu0 %834
          %v838 = vadd.f32 %v820, %v833
          %v839 = vadd.f32 %v821, %v835
          %840 = vrot.lane.b32.xlu0 %v686, 24
          %v841 = vpop.permute.xlu0 %840
          %842 = vrot.lane.b32.xlu0 %v687, 24
          %v843 = vpop.permute.xlu0 %842
          %v846 = vmul.f32 %v690, %v841
          %v847 = vmul.f32 %v691, %v843
          %848 = vrot.lane.b32.xlu0 %v688, 28
          %v849 = vpop.permute.xlu0 %848
          %850 = vrot.lane.b32.xlu0 %v689, 28
          %v851 = vpop.permute.xlu0 %850
          %v854 = vmul.f32 %v690, %v849
          %v855 = vmul.f32 %v691, %v851
          %858 = vrot.lane.b32.xlu0 %v854, 124
          %v859 = vpop.permute.xlu0 %858
          %860 = vrot.lane.b32.xlu0 %v855, 124
          %v861 = vpop.permute.xlu0 %860
          %v864 = vsub.f32 %v846, %v859
          %v865 = vsub.f32 %v847, %v861
          %866 = vrot.lane.b32.xlu0 %v686, 28
          %v867 = vpop.permute.xlu0 %866
          %868 = vrot.lane.b32.xlu0 %v687, 28
          %v869 = vpop.permute.xlu0 %868
          %v872 = vmul.f32 %v690, %v867
          %v873 = vmul.f32 %v691, %v869
          %874 = vrot.lane.b32.xlu0 %v688, 24
          %v875 = vpop.permute.xlu0 %874
          %876 = vrot.lane.b32.xlu0 %v689, 24
          %v877 = vpop.permute.xlu0 %876
          %v880 = vmul.f32 %v690, %v875
          %v881 = vmul.f32 %v691, %v877
          %884 = vrot.lane.b32.xlu0 %v880, 4
          %v885 = vpop.permute.xlu0 %884
          %886 = vrot.lane.b32.xlu0 %v881, 4
          %v887 = vpop.permute.xlu0 %886
          %v890 = vadd.f32 %v872, %v885
          %v891 = vadd.f32 %v873, %v887
          %vm892 = vcmask 31744
          %v893 = vsel %vm892, %v712, %v734
          %v894 = vsel %vm892, %v713, %v735
          %vm895 = vcmask 64512
          %v896 = vsel %vm895, %v893, %v760
          %v897 = vsel %vm895, %v894, %v761
          %vm898 = vcmask 97280
          %v899 = vsel %vm898, %v896, %v786
          %v900 = vsel %vm898, %v897, %v787
          %v901 = vsel %vm623, %v899, %v812
          %v902 = vsel %vm623, %v900, %v813
          %vm903 = vcmask 162816
          %v904 = vsel %vm903, %v901, %v838
          %v905 = vsel %vm903, %v902, %v839
          %vm906 = vcmask 195584
          %v907 = vsel %vm906, %v904, %v864
          %v908 = vsel %vm906, %v905, %v865
          %vm909 = vcmask 228352
          %v910 = vsel %vm909, %v907, %v890
          %v911 = vsel %vm909, %v908, %v891
          %v912 = vpack.c.bf16 %v911, %v910
          %v914 = vunpack.c.l.b16 %v912
          %v915 = vunpack.c.h.b16 %v912
          %v916 = vpack.c.b16 %v914, %v914
          %v917 = vpack.c.b16 %v915, %v915
          %vm920 = vcmask 257024
          %921 = vst.msk [vmem:[%s426] sm:$0xf] %vm920, %v916
          %922 = vst.msk [vmem:[%s426 + $0x4] sm:$0xf] %vm920, %v917
          %v923 = vld [vmem:[#allocation3] sm:$0xff]
          %v924 = vld [vmem:[#allocation3 + $0x8] sm:$0xff]
          %v925 = vmul.f32 %v923, %v686
          %v926 = vmul.f32 %v924, %v687
          %v927 = vmul.f32 %v923, %v697
          %v928 = vmul.f32 %v924, %v699
          %931 = vrot.lane.b32.xlu0 %v927, 124
          %v932 = vpop.permute.xlu0 %931
          %933 = vrot.lane.b32.xlu0 %v928, 124
          %v934 = vpop.permute.xlu0 %933
          %v937 = vsub.f32 %v925, %v932
          %v938 = vsub.f32 %v926, %v934
          %v939 = vmul.f32 %v923, %v717
          %v940 = vmul.f32 %v924, %v719
          %v941 = vmul.f32 %v923, %v688
          %v942 = vmul.f32 %v924, %v689
          %945 = vrot.lane.b32.xlu0 %v941, 4
          %v946 = vpop.permute.xlu0 %945
          %947 = vrot.lane.b32.xlu0 %v942, 4
          %v948 = vpop.permute.xlu0 %947
          %v951 = vadd.f32 %v939, %v946
          %v952 = vadd.f32 %v940, %v948
          %v953 = vmul.f32 %v923, %v737
          %v954 = vmul.f32 %v924, %v739
          %v955 = vmul.f32 %v923, %v745
          %v956 = vmul.f32 %v924, %v747
          %959 = vrot.lane.b32.xlu0 %v955, 124
          %v960 = vpop.permute.xlu0 %959
          %961 = vrot.lane.b32.xlu0 %v956, 124
          %v962 = vpop.permute.xlu0 %961
          %v965 = vsub.f32 %v953, %v960
          %v966 = vsub.f32 %v954, %v962
          %v967 = vmul.f32 %v923, %v763
          %v968 = vmul.f32 %v924, %v765
          %v969 = vmul.f32 %v923, %v771
          %v970 = vmul.f32 %v924, %v773
          %973 = vrot.lane.b32.xlu0 %v969, 4
          %v974 = vpop.permute.xlu0 %973
          %975 = vrot.lane.b32.xlu0 %v970, 4
          %v976 = vpop.permute.xlu0 %975
          %v979 = vadd.f32 %v967, %v974
          %v980 = vadd.f32 %v968, %v976
          %v981 = vsel %vm892, %v937, %v951
          %v982 = vsel %vm892, %v938, %v952
          %v983 = vsel %vm895, %v981, %v965
          %v984 = vsel %vm895, %v982, %v966
          %v985 = vsel %vm898, %v983, %v979
          %v986 = vsel %vm898, %v984, %v980
          %v987 = vpack.c.bf16 %v986, %v985
          %v989 = vunpack.c.l.b16 %v987
          %v990 = vunpack.c.h.b16 %v987
          %v991 = vpack.c.b16 %v989, %v989
          %v992 = vpack.c.b16 %v990, %v990
          %vm995 = vcmask 125952
          %996 = vst.msk [vmem:[%s433] sm:$0xf] %vm995, %v991
          %997 = vst.msk [vmem:[%s433 + $0x4] sm:$0xf] %vm995, %v992
          %v998 = vld [vmem:[#allocation4] sm:$0xff]
          %v999 = vld [vmem:[#allocation4 + $0x8] sm:$0xff]
          %v1000 = vpack.c.bf16 %v999, %v998
          %v1002 = vunpack.c.l.b16 %v1000
          %v1003 = vunpack.c.h.b16 %v1000
          %v1004 = vpack.c.b16 %v1002, %v1002
          %v1005 = vpack.c.b16 %v1003, %v1003
          %1008 = vst.msk [vmem:[%s440] sm:$0xf] %vm995, %v1004
          %1009 = vst.msk [vmem:[%s440 + $0x4] sm:$0xf] %vm995, %v1005
        $region56: #{tpu_custom_call.1} parent=43 // pred_fallthru
          _
        %s1010 = sand.u32 %s216, 1
        %s1011 = scalar_lea.sflag [#allocation7], %s1010
        %s1012 = sand.u32 %s216, 1
        %s1013 = smul.addr %s1012, 8
        %s1014 = scalar_lea.vmem [#allocation8], %s1013
        %s1015 = sand.u32 %s27, 1
        %s1016 = scalar_lea.sflag [#allocation10], %s1015
        %s1017 = sand.u32 %s244, 1
        %s1018 = smul.addr %s1017, 8
        %s1019 = scalar_lea.vmem [#allocation9], %s1018
        %s1020 = sand.u32 %s27, 1
        %s1021 = scalar_lea.sflag [#allocation10], %s1020
        %s1022 = sand.u32 %s272, 1
        %s1023 = smul.addr %s1022, 8
        %s1024 = scalar_lea.vmem [#allocation11], %s1023
        // Predicated region
        $region57: #{tpu_custom_call.1} parent=43 // pred_check
          %p1025 = pneg %p226
        $region58: #{tpu_custom_call.1} parent=43 // pred_check_branch
          %1027 = sbr.rel (%p1025) target = $region60
        $region59: #{tpu_custom_call.1} parent=43 // pred_region
          %s1028 = smul.u32 2, %s33
          %s1030 = ssub.s32 128, 128
          %1031 = vsyncadd %s1011, %s1030
          %s1032 = smul.addr %s32, 2
          %s1033 = sadd.s32 %s1028, %s1032
          %s1034 = smul.addr %s1033, 64
          %s1035 = scalar_lea.hbm %s6, %s1034
          %s1036 = sshll.u32 %s1014, 4
          %s1037 = int_to_ptr.vmem [resolvable:$true] %s1036
          %1042 = dma.vmem_to_hbm [thread:$0]  %s1037, 128, %s1035, %s1011, 64, 64, 4
        $region60: #{tpu_custom_call.1} parent=43 // pred_fallthru
          _
        // Predicated region
        $region61: #{tpu_custom_call.1} parent=43 // pred_check
          %p1043 = pneg %p254
        $region62: #{tpu_custom_call.1} parent=43 // pred_check_branch
          %1045 = sbr.rel (%p1043) target = $region64
        $region63: #{tpu_custom_call.1} parent=43 // pred_region
          %s1046 = smul.u32 2, %s33
          %s1048 = ssub.s32 128, 128
          %1049 = vsyncadd %s1016, %s1048
          %s1050 = smul.addr %s32, 2
          %s1051 = sadd.s32 %s1046, %s1050
          %s1052 = smul.addr %s1051, 64
          %s1053 = scalar_lea.hbm %s7, %s1052
          %s1054 = sshll.u32 %s1019, 4
          %s1055 = int_to_ptr.vmem [resolvable:$true] %s1054
          %1060 = dma.vmem_to_hbm [thread:$0]  %s1055, 128, %s1053, %s1016, 64, 64, 4
        $region64: #{tpu_custom_call.1} parent=43 // pred_fallthru
          _
        // Predicated region
        $region65: #{tpu_custom_call.1} parent=43 // pred_check
          %p1061 = pneg %p282
        $region66: #{tpu_custom_call.1} parent=43 // pred_check_branch
          %1063 = sbr.rel (%p1061) target = $region68
        $region67: #{tpu_custom_call.1} parent=43 // pred_region
          %s1064 = smul.u32 2, %s33
          %s1066 = ssub.s32 128, 128
          %1067 = vsyncadd %s1021, %s1066
          %s1068 = smul.addr %s32, 2
          %s1069 = sadd.s32 %s1064, %s1068
          %s1070 = smul.addr %s1069, 64
          %s1071 = scalar_lea.hbm %s8, %s1070
          %s1072 = sshll.u32 %s1024, 4
          %s1073 = int_to_ptr.vmem [resolvable:$true] %s1072
          %1078 = dma.vmem_to_hbm [thread:$0]  %s1073, 128, %s1071, %s1021, 64, 64, 4
        $region68: #{tpu_custom_call.1} parent=43 // pred_fallthru
          _
      $region44: #{tpu_custom_call.1} parent=5 // pred_fallthru
        _
      %p1079 = scmp.le.s32.totalorder 2, %s22
      // Predicated region
      $region69: #{tpu_custom_call.1} parent=5 // pred_check
        %p1080 = pneg %p1079
      $region70: #{tpu_custom_call.1} parent=5 // pred_check_branch
        %1082 = sbr.rel (%p1080) target = $region72
      $region71: #{tpu_custom_call.1} parent=5 // pred_region
        %s1083 = ssub.s32 %s22, 2
        // Predicated region
        $region73: #{tpu_custom_call.1} parent=71 // pred_check
          %p1084 = pneg %p232
        $region74: #{tpu_custom_call.1} parent=71 // pred_check_branch
          %1086 = sbr.rel (%p1084) target = $region76
        $region75: #{tpu_custom_call.1} parent=71 // pred_region
          %s1087 = sand.u32 %s217, 1
          %s1088 = scalar_lea.sflag [#allocation7], %s1087
          %s1089 = sand.u32 %s217, 1
          %s1090 = smul.addr %s1089, 8
          %s1091 = scalar_lea.vmem [#allocation8], %s1090
          %1092 = dma.done %s1088, 128
        $region76: #{tpu_custom_call.1} parent=71 // pred_fallthru
          _
        // Predicated region
        $region77: #{tpu_custom_call.1} parent=71 // pred_check
          %p1093 = pneg %p260
        $region78: #{tpu_custom_call.1} parent=71 // pred_check_branch
          %1095 = sbr.rel (%p1093) target = $region80
        $region79: #{tpu_custom_call.1} parent=71 // pred_region
          %s1096 = sand.u32 %s28, 1
          %s1097 = scalar_lea.sflag [#allocation10], %s1096
          %s1098 = sand.u32 %s245, 1
          %s1099 = smul.addr %s1098, 8
          %s1100 = scalar_lea.vmem [#allocation9], %s1099
          %1101 = dma.done %s1097, 128
        $region80: #{tpu_custom_call.1} parent=71 // pred_fallthru
          _
        // Predicated region
        $region81: #{tpu_custom_call.1} parent=71 // pred_check
          %p1102 = pneg %p288
        $region82: #{tpu_custom_call.1} parent=71 // pred_check_branch
          %1104 = sbr.rel (%p1102) target = $region84
        $region83: #{tpu_custom_call.1} parent=71 // pred_region
          %s1105 = sand.u32 %s28, 1
          %s1106 = scalar_lea.sflag [#allocation10], %s1105
          %s1107 = sand.u32 %s273, 1
          %s1108 = smul.addr %s1107, 8
          %s1109 = scalar_lea.vmem [#allocation11], %s1108
          %1110 = dma.done %s1106, 128
        $region84: #{tpu_custom_call.1} parent=71 // pred_fallthru
          _
      $region72: #{tpu_custom_call.1} parent=5 // pred_fallthru
        _
    $region6: #{tpu_custom_call.1} parent=1 // loop_footer
      %s26 = sadd.s32 1, %s22
    $region7: #{tpu_custom_call.1} parent=1 // loop_footer_branch
      %21 = sbr.rel target = $region3
    $region8: #{tpu_custom_call.1} parent=1 // loop_exit
      _
    %1111 = vsyncpa [#allocation6], 1
    %s1112 = scalar_lea.sflag [#allocation6], 1
    %1113 = vsyncpa %s1112, 1
    %1114 = vsyncpa [#allocation7], 1
    %s1115 = scalar_lea.sflag [#allocation7], 1
    %1116 = vsyncpa %s1115, 1
    %1117 = vsyncpa [#allocation10], 1
    %s1118 = scalar_lea.sflag [#allocation10], 1
    %1119 = vsyncpa %s1118, 1

</llo_original>
